<compile_context>
chip_gen: v6e
topology: v6e:2x2x1
jax: 0.10.0
libtpu: 0.0.40
codegen_flags: <defaults>
</compile_context>

<pallas_src>
import functools

import jax
import jax.numpy as jnp
from jax import lax
from jax.experimental import pallas as pl
from jax.experimental.pallas import tpu as pltpu

TIME_BLOCK = 8  # timesteps per grid step (amortizes per-grid-step overhead)


def _round_up(x, m):
    return (x + m - 1) // m * m


def _scoped_vmem_limit(*nbytes):
    """Scoped-VMEM limit sized to resident blocks (x2 double-buffering) + headroom."""
    need = 2 * sum(int(b) for b in nbytes) + (4 << 20)
    return int(min(need, 48 << 20))  # stay safely under v7x's 64 MiB VMEM


# ----------------------------------------------------------------------------
# Encoder kernel: one grid step = TIME_BLOCK source timesteps.
# Input projection is precomputed in the wrapper; only h @ Whh recurs.
# ----------------------------------------------------------------------------
def encoder_kernel(len_ref, xproj_ref, whh_ref, h_out_ref, c_out_ref,
                   h_scr, c_scr, *, hidden, steps_per_block):
    blk = pl.program_id(0)

    @pl.when(blk == 0)
    def _init():
        h_scr[...] = jnp.zeros_like(h_scr)
        c_scr[...] = jnp.zeros_like(c_scr)

    lens = len_ref[...]                      # (B, 1) int32
    whh = whh_ref[...]                       # (H, 4H), VMEM-resident

    def step(k, carry):
        h, c = carry
        t = blk * steps_per_block + k        # global source timestep
        gates = xproj_ref[k] + jnp.dot(h, whh, preferred_element_type=jnp.float32)
        i = jax.nn.sigmoid(gates[:, 0 * hidden:1 * hidden])
        f = jax.nn.sigmoid(gates[:, 1 * hidden:2 * hidden])
        g = jnp.tanh(gates[:, 2 * hidden:3 * hidden])
        o = jax.nn.sigmoid(gates[:, 3 * hidden:4 * hidden])
        c_new = f * c + i * g
        h_new = o * jnp.tanh(c_new)
        # pack_padded_sequence semantics: freeze state once t >= src_len[b].
        m = (lens > t).astype(jnp.float32)
        h = m * h_new + (1.0 - m) * h
        c = m * c_new + (1.0 - m) * c
        return h, c

    h, c = lax.fori_loop(0, steps_per_block, step, (h_scr[...], c_scr[...]),
                         unroll=True)
    h_scr[...] = h
    c_scr[...] = c

    @pl.when(blk == pl.num_programs(0) - 1)
    def _emit():
        h_out_ref[...] = h
        c_out_ref[...] = c


def run_encoder(src_len, xproj, w_hh, *, hidden, steps_per_block):
    Sp, Bp, G = xproj.shape
    vmem_limit = _scoped_vmem_limit(
        src_len.nbytes,
        steps_per_block * Bp * G * 4,      # streamed xproj block
        w_hh.nbytes,
        4 * Bp * hidden * 4,               # h/c outputs + h/c scratch
    )
    grid_spec = pltpu.PrefetchScalarGridSpec(
        num_scalar_prefetch=0,
        grid=(Sp // steps_per_block,),
        in_specs=[
            pl.BlockSpec((Bp, 1), lambda i: (0, 0)),                       # src_len
            pl.BlockSpec((steps_per_block, Bp, G), lambda i: (i, 0, 0)),   # xproj
            pl.BlockSpec((hidden, G), lambda i: (0, 0)),                   # Whh
        ],
        out_specs=(
            pl.BlockSpec((Bp, hidden), lambda i: (0, 0)),
            pl.BlockSpec((Bp, hidden), lambda i: (0, 0)),
        ),
        scratch_shapes=[
            pltpu.VMEM((Bp, hidden), jnp.float32),    # h carry across grid steps
            pltpu.VMEM((Bp, hidden), jnp.float32),    # c carry across grid steps
        ],
    )
    return pl.pallas_call(
        functools.partial(encoder_kernel, hidden=hidden,
                          steps_per_block=steps_per_block),
        grid_spec=grid_spec,
        out_shape=(jax.ShapeDtypeStruct((Bp, hidden), jnp.float32),
                   jax.ShapeDtypeStruct((Bp, hidden), jnp.float32)),
        compiler_params=pltpu.CompilerParams(
            dimension_semantics=("arbitrary",),
            vmem_limit_bytes=vmem_limit),
    )(src_len, xproj, w_hh)


# ----------------------------------------------------------------------------
# Decoder kernel: one grid step = TIME_BLOCK target timesteps.
# Embedding lookup, fused LSTM cell, fc_out, gated argmax, next-token select.
# ----------------------------------------------------------------------------
def decoder_kernel(tf_ref, tok0_ref, trg_ref, h0_ref, c0_ref, emb_ref, w_ref,
                   b_ref, fcw_ref, fcb_ref, pred_ref,
                   h_scr, c_scr, tok_scr, *, hidden, vocab, vocab_pad,
                   steps_per_block):
    blk = pl.program_id(0)

    @pl.when(blk == 0)
    def _init():
        h_scr[...] = h0_ref[...]
        c_scr[...] = c0_ref[...]
        tok_scr[...] = tok0_ref[...]

    B = h_scr.shape[0]
    lane = lax.broadcasted_iota(jnp.int32, (B, vocab_pad), 1)
    emb = emb_ref[...]          # (Vp, E)
    w = w_ref[...]              # (E + H, 4H) fused [Wih; Whh]
    b = b_ref[...]              # (1, 4H)  -> sublane broadcast in the add
    fcw = fcw_ref[...]          # (H, Vp)
    fcb = fcb_ref[...]          # (1, Vp)

    def step(k, carry):
        h, c = carry
        t = blk * steps_per_block + k
        tok = tok_scr[...]                                    # (B, 1) int32
        # TODO(synk): at production vocab sizes replace this one-hot matmul
        # with a scalar-indexed / DMA row gather from an HBM embedding table.
        onehot = (lane == tok).astype(jnp.float32)            # (B, Vp)
        x = jnp.dot(onehot, emb, preferred_element_type=jnp.float32)
        xh = jnp.concatenate([x, h], axis=1)                  # (B, E+H), in vregs
        gates = jnp.dot(xh, w, preferred_element_type=jnp.float32) + b
        i = jax.nn.sigmoid(gates[:, 0 * hidden:1 * hidden])
        f = jax.nn.sigmoid(gates[:, 1 * hidden:2 * hidden])
        g = jnp.tanh(gates[:, 2 * hidden:3 * hidden])
        o = jax.nn.sigmoid(gates[:, 3 * hidden:4 * hidden])
        c_new = f * c + i * g
        h_new = o * jnp.tanh(c_new)

        # fc_out projection; lane-dense (B, Vp) store.
        # TODO(synk): tile fc_w / pred over a vocab grid axis for large vocabs.
        pred = jnp.dot(h_new, fcw, preferred_element_type=jnp.float32) + fcb
        pred_ref[k] = pred

        # Next input token: teacher forcing vs greedy argmax.  The argmax
        # vector passes only run on non-teacher-forced steps.
        tok_scr[...] = trg_ref[k]

        @pl.when(tf_ref[t] == 0)
        def _greedy():
            masked = jnp.where(lane < vocab, pred, jnp.float32(-1e30))
            mx = jnp.max(masked, axis=1, keepdims=True)
            # first-max tie break; float lane ids exact for vocab_pad < 2**24
            cand = jnp.where(masked == mx, lane.astype(jnp.float32),
                             jnp.float32(vocab_pad))
            tok_scr[...] = jnp.min(cand, axis=1, keepdims=True).astype(jnp.int32)

        return h_new, c_new

    h, c = lax.fori_loop(0, steps_per_block, step, (h_scr[...], c_scr[...]),
                         unroll=True)
    h_scr[...] = h
    c_scr[...] = c


def run_decoder(tf_flags, tok0, trg_next, h0, c0, dec_emb, w, b, fc_w, fc_b,
                *, emb_dim, hidden, vocab, vocab_pad, steps_per_block):
    Tp, Bp, _ = trg_next.shape
    vmem_limit = _scoped_vmem_limit(
        tok0.nbytes, steps_per_block * Bp * 4, h0.nbytes, c0.nbytes,
        dec_emb.nbytes, w.nbytes, b.nbytes, fc_w.nbytes, fc_b.nbytes,
        steps_per_block * Bp * vocab_pad * 4,        # pred output block
        2 * Bp * hidden * 4 + Bp * 4,                # scratch
    )
    grid_spec = pltpu.PrefetchScalarGridSpec(
        num_scalar_prefetch=1,                  # teacher-forcing flags in SMEM
        grid=(Tp // steps_per_block,),
        in_specs=[
            pl.BlockSpec((Bp, 1), lambda i, tf: (0, 0)),                      # tok0
            pl.BlockSpec((steps_per_block, Bp, 1), lambda i, tf: (i, 0, 0)),  # trg
            pl.BlockSpec((Bp, hidden), lambda i, tf: (0, 0)),                 # h0
            pl.BlockSpec((Bp, hidden), lambda i, tf: (0, 0)),                 # c0
            pl.BlockSpec((vocab_pad, emb_dim), lambda i, tf: (0, 0)),         # emb
            pl.BlockSpec((emb_dim + hidden, 4 * hidden), lambda i, tf: (0, 0)),
            pl.BlockSpec((1, 4 * hidden), lambda i, tf: (0, 0)),              # bias
            pl.BlockSpec((hidden, vocab_pad), lambda i, tf: (0, 0)),          # fc_w
            pl.BlockSpec((1, vocab_pad), lambda i, tf: (0, 0)),               # fc_b
        ],
        out_specs=pl.BlockSpec((steps_per_block, Bp, vocab_pad),
                               lambda i, tf: (i, 0, 0)),
        scratch_shapes=[
            pltpu.VMEM((Bp, hidden), jnp.float32),    # h carry across grid steps
            pltpu.VMEM((Bp, hidden), jnp.float32),    # c carry across grid steps
            pltpu.VMEM((Bp, 1), jnp.int32),           # current token
        ],
    )
    return pl.pallas_call(
        functools.partial(decoder_kernel, hidden=hidden, vocab=vocab,
                          vocab_pad=vocab_pad, steps_per_block=steps_per_block),
        grid_spec=grid_spec,
        out_shape=jax.ShapeDtypeStruct((Tp, Bp, vocab_pad), jnp.float32),
        compiler_params=pltpu.CompilerParams(
            dimension_semantics=("arbitrary",),
            vmem_limit_bytes=vmem_limit),
    )(tf_flags, tok0, trg_next, h0, c0, dec_emb, w, b, fc_w, fc_b)


# ----------------------------------------------------------------------------
# Seq2Seq forward (matches torch module semantics)
# ----------------------------------------------------------------------------
def seq2seq_forward(params, src, src_len, trg, teacher_forcing_ratio=0.5,
                    tf_key=None):
    """src: (B, S) int32, src_len: (B,) int32, trg: (B, T) int32.
    Returns (B, T, output_dim) float32 with outputs[:, 0] == 0."""
    if tf_key is None:
        tf_key = jax.random.PRNGKey(42)

    B, S = src.shape
    T = trg.shape[1]
    Ep, Hp, Vp = params["emb_pad"], params["hid_pad"], params["vocab_pad"]
    V = params["trg_vocab"]
    # TODO(synk): for real workloads with B > 8, pad batch toward the MXU row
    # count (128/256) instead of the minimum multiple of 8.
    Bp = _round_up(max(B, 8), 8)
    K = TIME_BLOCK

    # ---- encoder -------------------------------------------------------
    Sp = _round_up(S, K)
    src_emb = jnp.take(params["enc_emb"], src, axis=0)              # (B, S, Ep)
    # Input projection hoisted out of the recurrence: one parallel matmul,
    # bias folded in.
    xproj = jnp.dot(src_emb.reshape(B * S, Ep), params["enc_w_ih"],
                    preferred_element_type=jnp.float32) + params["enc_b"]
    xproj = xproj.reshape(B, S, 4 * Hp).transpose(1, 0, 2)          # (S, B, 4Hp)
    xproj = jnp.pad(xproj, ((0, Sp - S), (0, Bp - B), (0, 0)))
    len_p = jnp.pad(src_len.astype(jnp.int32), (0, Bp - B))[:, None]

    h, c = run_encoder(len_p, xproj, params["enc_w_hh"],
                       hidden=Hp, steps_per_block=K)

    # ---- decoder -------------------------------------------------------
    Tm1 = T - 1
    Tp = _round_up(Tm1, K)
    tok0 = jnp.pad(trg[:, 0].astype(jnp.int32), (0, Bp - B))[:, None]
    trg_next = trg[:, 1:].astype(jnp.int32).transpose(1, 0)          # (T-1, B)
    trg_next = jnp.pad(trg_next, ((0, Tp - Tm1), (0, Bp - B)))[:, :, None]
    # one scalar coin flip per step, drawn up front (like torch.rand(1) per t)
    tf_flags = (jax.random.uniform(tf_key, (Tp,)) <
                teacher_forcing_ratio).astype(jnp.int32)

    preds = run_decoder(tf_flags, tok0, trg_next, h, c,
                        params["dec_emb"], params["dec_w"], params["dec_b"],
                        params["dec_fc_w"], params["dec_fc_b"],
                        emb_dim=Ep, hidden=Hp, vocab=V, vocab_pad=Vp,
                        steps_per_block=K)

    preds = preds[:Tm1, :B, :V]                                      # (T-1, B, V)
    outputs = jnp.concatenate(
        [jnp.zeros((1, B, V), jnp.float32), preds], axis=0)          # (T, B, V)
    return jnp.transpose(outputs, (1, 0, 2))                         # (B, T, V)


# ----------------------------------------------------------------------------
# Deterministic parameter init (natural shapes, zero-padded to TPU tiles)
# ----------------------------------------------------------------------------
def _pad_gate_w(w, in_dim, in_pad, h_dim, h_pad):
    """Pad (in_dim, 4H) gate weight to (in_pad, 4Hp); each gate block lands on
    an Hp-lane boundary.  Zero padding keeps padded hidden units exactly 0."""
    out = jnp.zeros((in_pad, 4 * h_pad), jnp.float32)
    for g in range(4):
        out = out.at[:in_dim, g * h_pad:g * h_pad + h_dim].set(
            w[:, g * h_dim:(g + 1) * h_dim])
    return out


def _pad_gate_b(b, h_dim, h_pad):
    out = jnp.zeros((1, 4 * h_pad), jnp.float32)
    for g in range(4):
        out = out.at[:, g * h_pad:g * h_pad + h_dim].set(
            b[:, g * h_dim:(g + 1) * h_dim])
    return out


def init_params(key, src_vocab, trg_vocab, emb_dim, hid_dim):
    Ep = _round_up(emb_dim, 128)
    Hp = _round_up(hid_dim, 128)
    Vp = _round_up(trg_vocab, 128)
    assert Vp < (1 << 24), "float lane-id argmax only exact below 2^24"
    ks = jax.random.split(key, 10)
    s = 0.1
    enc_emb = s * jax.random.normal(ks[0], (src_vocab, emb_dim), jnp.float32)
    enc_wih = s * jax.random.normal(ks[1], (emb_dim, 4 * hid_dim), jnp.float32)
    enc_whh = s * jax.random.normal(ks[2], (hid_dim, 4 * hid_dim), jnp.float32)
    enc_b = s * jax.random.normal(ks[3], (1, 4 * hid_dim), jnp.float32)
    dec_emb = s * jax.random.normal(ks[4], (trg_vocab, emb_dim), jnp.float32)
    dec_wih = s * jax.random.normal(ks[5], (emb_dim, 4 * hid_dim), jnp.float32)
    dec_whh = s * jax.random.normal(ks[6], (hid_dim, 4 * hid_dim), jnp.float32)
    dec_b = s * jax.random.normal(ks[7], (1, 4 * hid_dim), jnp.float32)
    fc_w = s * jax.random.normal(ks[8], (hid_dim, trg_vocab), jnp.float32)
    fc_b = s * jax.random.normal(ks[9], (1, trg_vocab), jnp.float32)

    dec_w = jnp.concatenate(
        [_pad_gate_w(dec_wih, emb_dim, Ep, hid_dim, Hp),
         _pad_gate_w(dec_whh, hid_dim, Hp, hid_dim, Hp)], axis=0)

    # TODO(synk): cast large weights (LSTM, dec_emb, dec_fc_w) to bfloat16 at
    # production hidden/vocab sizes (halves VMEM residency and HBM DMA).
    return {
        "emb_pad": Ep, "hid_pad": Hp, "vocab_pad": Vp, "trg_vocab": trg_vocab,
        "enc_emb": jnp.pad(enc_emb, ((0, 0), (0, Ep - emb_dim))),
        "enc_w_ih": _pad_gate_w(enc_wih, emb_dim, Ep, hid_dim, Hp),
        "enc_w_hh": _pad_gate_w(enc_whh, hid_dim, Hp, hid_dim, Hp),
        "enc_b": _pad_gate_b(enc_b, hid_dim, Hp),
        "dec_emb": jnp.pad(dec_emb, ((0, Vp - trg_vocab), (0, Ep - emb_dim))),
        "dec_w": dec_w,
        "dec_b": _pad_gate_b(dec_b, hid_dim, Hp),
        "dec_fc_w": jnp.pad(fc_w, ((0, Hp - hid_dim), (0, Vp - trg_vocab))),
        "dec_fc_b": jnp.pad(fc_b, ((0, 0), (0, Vp - trg_vocab))),
    }


if __name__ == "__main__":
    B, S, T = 2, 8, 8
    SRC_VOCAB, TRG_VOCAB = 16, 16
    EMB, HID = 16, 32

    key = jax.random.PRNGKey(0)
    k_params, k_src, k_trg, k_tf = jax.random.split(key, 4)

    params = init_params(k_params, SRC_VOCAB, TRG_VOCAB, EMB, HID)

    src = jax.random.randint(k_src, (B, S), 0, SRC_VOCAB, dtype=jnp.int32)
    trg = jax.random.randint(k_trg, (B, T), 0, TRG_VOCAB, dtype=jnp.int32)
    src_len = jnp.array([S, S - 3], dtype=jnp.int32)

    outputs = seq2seq_forward(params, src, src_len, trg,
                              teacher_forcing_ratio=0.5, tf_key=k_tf)
    outputs = jax.block_until_ready(outputs)

    assert outputs.shape == (B, T, TRG_VOCAB)
    assert bool(jnp.all(outputs[:, 0] == 0.0))
    assert bool(jnp.all(jnp.isfinite(outputs)))
    print("KERNEL_OK")
</pallas_src>

<mosaic_0001>
module attributes {stable_mosaic.version = 11 : i64} {
  func.func @encoder_kernel(%arg0: i32, %arg1: memref<8x1xi32, #tpu.memory_space<vmem>>, %arg2: memref<8x8x512xf32, #tpu.memory_space<vmem>>, %arg3: memref<128x512xf32, #tpu.memory_space<vmem>>, %arg4: memref<8x128xf32, #tpu.memory_space<vmem>>, %arg5: memref<8x128xf32, #tpu.memory_space<vmem>>, %arg6: memref<8x128xf32, #tpu.memory_space<vmem>>, %arg7: memref<8x128xf32, #tpu.memory_space<vmem>>) attributes {dimension_semantics = [#tpu.dimension_semantics<arbitrary>], iteration_bounds = array<i64: 1>, scalar_prefetch = 0 : i64, scratch_operands = 2 : i64, tpu.core_type = #tpu.core_type<tc>, window_params = [{pipeline_mode = #tpu.pipeline_mode<synchronous>, transform_indices = @transform_0, window_bounds = array<i64: 8, 1>}, {transform_indices = @transform_1, window_bounds = array<i64: 8, 8, 512>}, {pipeline_mode = #tpu.pipeline_mode<synchronous>, transform_indices = @transform_2, window_bounds = array<i64: 128, 512>}, {pipeline_mode = #tpu.pipeline_mode<synchronous>, transform_indices = @transform_3, window_bounds = array<i64: 8, 128>}, {pipeline_mode = #tpu.pipeline_mode<synchronous>, transform_indices = @transform_4, window_bounds = array<i64: 8, 128>}]} {
    %c0_i32 = arith.constant 0 : i32
    %0 = arith.cmpi eq, %arg0, %c0_i32 : i32
    %1 = arith.extui %0 : i1 to i32
    %c0_i32_0 = arith.constant 0 : i32
    %2 = arith.cmpi ne, %1, %c0_i32_0 : i32
    scf.if %2 {
      %cst_86 = arith.constant 0.000000e+00 : f32
      %412 = vector.broadcast %cst_86 : f32 to vector<8x128xf32>
      %c0_87 = arith.constant 0 : index
      %c0_88 = arith.constant 0 : index
      %413 = vector.load %arg6[%c0_87, %c0_88] : memref<8x128xf32, #tpu.memory_space<vmem>>, vector<8x128xf32>
      tpu.vector_store %arg6[%c0_87, %c0_88], %412 {strides = array<i32>} : memref<8x128xf32, #tpu.memory_space<vmem>>, vector<8x128xf32>,
      %cst_89 = arith.constant 0.000000e+00 : f32
      %414 = vector.broadcast %cst_89 : f32 to vector<8x128xf32>
      %c0_90 = arith.constant 0 : index
      %c0_91 = arith.constant 0 : index
      %415 = vector.load %arg7[%c0_90, %c0_91] : memref<8x128xf32, #tpu.memory_space<vmem>>, vector<8x128xf32>
      tpu.vector_store %arg7[%c0_90, %c0_91], %414 {strides = array<i32>} : memref<8x128xf32, #tpu.memory_space<vmem>>, vector<8x128xf32>,
    } else {
    }
    %c0 = arith.constant 0 : index
    %c0_1 = arith.constant 0 : index
    %3 = vector.load %arg1[%c0, %c0_1] : memref<8x1xi32, #tpu.memory_space<vmem>>, vector<8x1xi32>
    %c0_2 = arith.constant 0 : index
    %c0_3 = arith.constant 0 : index
    %4 = vector.load %arg3[%c0_2, %c0_3] : memref<128x512xf32, #tpu.memory_space<vmem>>, vector<128x512xf32>
    %c0_4 = arith.constant 0 : index
    %c0_5 = arith.constant 0 : index
    %5 = vector.load %arg6[%c0_4, %c0_5] : memref<8x128xf32, #tpu.memory_space<vmem>>, vector<8x128xf32>
    %c0_6 = arith.constant 0 : index
    %c0_7 = arith.constant 0 : index
    %6 = vector.load %arg7[%c0_6, %c0_7] : memref<8x128xf32, #tpu.memory_space<vmem>>, vector<8x128xf32>
    %c0_i32_8 = arith.constant 0 : i32
    %c8_i32 = arith.constant 8 : i32
    %7 = arith.muli %arg0, %c8_i32 : i32
    %8 = arith.addi %7, %c0_i32_8 : i32
    %9 = arith.index_cast %c0_i32_8 : i32 to index
    %c0_9 = arith.constant 0 : index
    %c0_10 = arith.constant 0 : index
    %10 = vector.load %arg2[%9, %c0_9, %c0_10] : memref<8x8x512xf32, #tpu.memory_space<vmem>>, vector<1x8x512xf32>
    %11 = vector.shape_cast %10 : vector<1x8x512xf32> to vector<8x512xf32>
    %cst = arith.constant dense<0.000000e+00> : vector<8x512xf32>
    %12 = tpu.matmul %5, %4, %cst {dimension_numbers = #tpu.dot_dimension_numbers<[1], [0], [0], [1], [0, 0, 1, 1], [], []>} : vector<8x128xf32>, vector<128x512xf32>, vector<8x512xf32> -> vector<8x512xf32>
    %13 = arith.addf %11, %12 : vector<8x512xf32>
    %14 = vector.extract_strided_slice %13 {offsets = [0, 0], sizes = [8, 128], strides = [1, 1]} : vector<8x512xf32> to vector<8x128xf32>
    %15 = arith.negf %14 : vector<8x128xf32>
    %16 = math.exp %15 : vector<8x128xf32>
    %cst_11 = arith.constant 1.000000e+00 : f32
    %17 = vector.broadcast %cst_11 : f32 to vector<8x128xf32>
    %18 = arith.addf %17, %16 : vector<8x128xf32>
    %19 = arith.divf %17, %18 : vector<8x128xf32>
    %20 = vector.extract_strided_slice %13 {offsets = [0, 128], sizes = [8, 128], strides = [1, 1]} : vector<8x512xf32> to vector<8x128xf32>
    %21 = arith.negf %20 : vector<8x128xf32>
    %22 = math.exp %21 : vector<8x128xf32>
    %cst_12 = arith.constant 1.000000e+00 : f32
    %23 = vector.broadcast %cst_12 : f32 to vector<8x128xf32>
    %24 = arith.addf %23, %22 : vector<8x128xf32>
    %25 = arith.divf %23, %24 : vector<8x128xf32>
    %26 = vector.extract_strided_slice %13 {offsets = [0, 256], sizes = [8, 128], strides = [1, 1]} : vector<8x512xf32> to vector<8x128xf32>
    %27 = math.tanh %26 : vector<8x128xf32>
    %28 = vector.extract_strided_slice %13 {offsets = [0, 384], sizes = [8, 128], strides = [1, 1]} : vector<8x512xf32> to vector<8x128xf32>
    %29 = arith.negf %28 : vector<8x128xf32>
    %30 = math.exp %29 : vector<8x128xf32>
    %cst_13 = arith.constant 1.000000e+00 : f32
    %31 = vector.broadcast %cst_13 : f32 to vector<8x128xf32>
    %32 = arith.addf %31, %30 : vector<8x128xf32>
    %33 = arith.divf %31, %32 : vector<8x128xf32>
    %34 = arith.mulf %25, %6 : vector<8x128xf32>
    %35 = arith.mulf %19, %27 : vector<8x128xf32>
    %36 = arith.addf %34, %35 : vector<8x128xf32>
    %37 = math.tanh %36 : vector<8x128xf32>
    %38 = arith.mulf %33, %37 : vector<8x128xf32>
    %39 = vector.broadcast %8 : i32 to vector<8x1xi32>
    %40 = arith.cmpi sgt, %3, %39 : vector<8x1xi32>
    %41 = arith.extui %40 : vector<8x1xi1> to vector<8x1xi32>
    %42 = arith.sitofp %41 : vector<8x1xi32> to vector<8x1xf32>
    %43 = vector.broadcast %42 : vector<8x1xf32> to vector<8x128xf32>
    %44 = arith.mulf %43, %38 : vector<8x128xf32>
    %cst_14 = arith.constant 1.000000e+00 : f32
    %45 = vector.broadcast %cst_14 : f32 to vector<8x1xf32>
    %46 = arith.subf %45, %42 : vector<8x1xf32>
    %47 = vector.broadcast %46 : vector<8x1xf32> to vector<8x128xf32>
    %48 = arith.mulf %47, %5 : vector<8x128xf32>
    %49 = arith.addf %44, %48 : vector<8x128xf32>
    %50 = vector.broadcast %42 : vector<8x1xf32> to vector<8x128xf32>
    %51 = arith.mulf %50, %36 : vector<8x128xf32>
    %cst_15 = arith.constant 1.000000e+00 : f32
    %52 = vector.broadcast %cst_15 : f32 to vector<8x1xf32>
    %53 = arith.subf %52, %42 : vector<8x1xf32>
    %54 = vector.broadcast %53 : vector<8x1xf32> to vector<8x128xf32>
    %55 = arith.mulf %54, %6 : vector<8x128xf32>
    %56 = arith.addf %51, %55 : vector<8x128xf32>
    %c1_i32 = arith.constant 1 : i32
    %c8_i32_16 = arith.constant 8 : i32
    %57 = arith.muli %arg0, %c8_i32_16 : i32
    %58 = arith.addi %57, %c1_i32 : i32
    %59 = arith.index_cast %c1_i32 : i32 to index
    %c0_17 = arith.constant 0 : index
    %c0_18 = arith.constant 0 : index
    %60 = vector.load %arg2[%59, %c0_17, %c0_18] : memref<8x8x512xf32, #tpu.memory_space<vmem>>, vector<1x8x512xf32>
    %61 = vector.shape_cast %60 : vector<1x8x512xf32> to vector<8x512xf32>
    %cst_19 = arith.constant dense<0.000000e+00> : vector<8x512xf32>
    %62 = tpu.matmul %49, %4, %cst_19 {dimension_numbers = #tpu.dot_dimension_numbers<[1], [0], [0], [1], [0, 0, 1, 1], [], []>} : vector<8x128xf32>, vector<128x512xf32>, vector<8x512xf32> -> vector<8x512xf32>
    %63 = arith.addf %61, %62 : vector<8x512xf32>
    %64 = vector.extract_strided_slice %63 {offsets = [0, 0], sizes = [8, 128], strides = [1, 1]} : vector<8x512xf32> to vector<8x128xf32>
    %65 = arith.negf %64 : vector<8x128xf32>
    %66 = math.exp %65 : vector<8x128xf32>
    %cst_20 = arith.constant 1.000000e+00 : f32
    %67 = vector.broadcast %cst_20 : f32 to vector<8x128xf32>
    %68 = arith.addf %67, %66 : vector<8x128xf32>
    %69 = arith.divf %67, %68 : vector<8x128xf32>
    %70 = vector.extract_strided_slice %63 {offsets = [0, 128], sizes = [8, 128], strides = [1, 1]} : vector<8x512xf32> to vector<8x128xf32>
    %71 = arith.negf %70 : vector<8x128xf32>
    %72 = math.exp %71 : vector<8x128xf32>
    %cst_21 = arith.constant 1.000000e+00 : f32
    %73 = vector.broadcast %cst_21 : f32 to vector<8x128xf32>
    %74 = arith.addf %73, %72 : vector<8x128xf32>
    %75 = arith.divf %73, %74 : vector<8x128xf32>
    %76 = vector.extract_strided_slice %63 {offsets = [0, 256], sizes = [8, 128], strides = [1, 1]} : vector<8x512xf32> to vector<8x128xf32>
    %77 = math.tanh %76 : vector<8x128xf32>
    %78 = vector.extract_strided_slice %63 {offsets = [0, 384], sizes = [8, 128], strides = [1, 1]} : vector<8x512xf32> to vector<8x128xf32>
    %79 = arith.negf %78 : vector<8x128xf32>
    %80 = math.exp %79 : vector<8x128xf32>
    %cst_22 = arith.constant 1.000000e+00 : f32
    %81 = vector.broadcast %cst_22 : f32 to vector<8x128xf32>
    %82 = arith.addf %81, %80 : vector<8x128xf32>
    %83 = arith.divf %81, %82 : vector<8x128xf32>
    %84 = arith.mulf %75, %56 : vector<8x128xf32>
    %85 = arith.mulf %69, %77 : vector<8x128xf32>
    %86 = arith.addf %84, %85 : vector<8x128xf32>
    %87 = math.tanh %86 : vector<8x128xf32>
    %88 = arith.mulf %83, %87 : vector<8x128xf32>
    %89 = vector.broadcast %58 : i32 to vector<8x1xi32>
    %90 = arith.cmpi sgt, %3, %89 : vector<8x1xi32>
    %91 = arith.extui %90 : vector<8x1xi1> to vector<8x1xi32>
    %92 = arith.sitofp %91 : vector<8x1xi32> to vector<8x1xf32>
    %93 = vector.broadcast %92 : vector<8x1xf32> to vector<8x128xf32>
    %94 = arith.mulf %93, %88 : vector<8x128xf32>
    %cst_23 = arith.constant 1.000000e+00 : f32
    %95 = vector.broadcast %cst_23 : f32 to vector<8x1xf32>
    %96 = arith.subf %95, %92 : vector<8x1xf32>
    %97 = vector.broadcast %96 : vector<8x1xf32> to vector<8x128xf32>
    %98 = arith.mulf %97, %49 : vector<8x128xf32>
    %99 = arith.addf %94, %98 : vector<8x128xf32>
    %100 = vector.broadcast %92 : vector<8x1xf32> to vector<8x128xf32>
    %101 = arith.mulf %100, %86 : vector<8x128xf32>
    %cst_24 = arith.constant 1.000000e+00 : f32
    %102 = vector.broadcast %cst_24 : f32 to vector<8x1xf32>
    %103 = arith.subf %102, %92 : vector<8x1xf32>
    %104 = vector.broadcast %103 : vector<8x1xf32> to vector<8x128xf32>
    %105 = arith.mulf %104, %56 : vector<8x128xf32>
    %106 = arith.addf %101, %105 : vector<8x128xf32>
    %c2_i32 = arith.constant 2 : i32
    %c8_i32_25 = arith.constant 8 : i32
    %107 = arith.muli %arg0, %c8_i32_25 : i32
    %108 = arith.addi %107, %c2_i32 : i32
    %109 = arith.index_cast %c2_i32 : i32 to index
    %c0_26 = arith.constant 0 : index
    %c0_27 = arith.constant 0 : index
    %110 = vector.load %arg2[%109, %c0_26, %c0_27] : memref<8x8x512xf32, #tpu.memory_space<vmem>>, vector<1x8x512xf32>
    %111 = vector.shape_cast %110 : vector<1x8x512xf32> to vector<8x512xf32>
    %cst_28 = arith.constant dense<0.000000e+00> : vector<8x512xf32>
    %112 = tpu.matmul %99, %4, %cst_28 {dimension_numbers = #tpu.dot_dimension_numbers<[1], [0], [0], [1], [0, 0, 1, 1], [], []>} : vector<8x128xf32>, vector<128x512xf32>, vector<8x512xf32> -> vector<8x512xf32>
    %113 = arith.addf %111, %112 : vector<8x512xf32>
    %114 = vector.extract_strided_slice %113 {offsets = [0, 0], sizes = [8, 128], strides = [1, 1]} : vector<8x512xf32> to vector<8x128xf32>
    %115 = arith.negf %114 : vector<8x128xf32>
    %116 = math.exp %115 : vector<8x128xf32>
    %cst_29 = arith.constant 1.000000e+00 : f32
    %117 = vector.broadcast %cst_29 : f32 to vector<8x128xf32>
    %118 = arith.addf %117, %116 : vector<8x128xf32>
    %119 = arith.divf %117, %118 : vector<8x128xf32>
    %120 = vector.extract_strided_slice %113 {offsets = [0, 128], sizes = [8, 128], strides = [1, 1]} : vector<8x512xf32> to vector<8x128xf32>
    %121 = arith.negf %120 : vector<8x128xf32>
    %122 = math.exp %121 : vector<8x128xf32>
    %cst_30 = arith.constant 1.000000e+00 : f32
    %123 = vector.broadcast %cst_30 : f32 to vector<8x128xf32>
    %124 = arith.addf %123, %122 : vector<8x128xf32>
    %125 = arith.divf %123, %124 : vector<8x128xf32>
    %126 = vector.extract_strided_slice %113 {offsets = [0, 256], sizes = [8, 128], strides = [1, 1]} : vector<8x512xf32> to vector<8x128xf32>
    %127 = math.tanh %126 : vector<8x128xf32>
    %128 = vector.extract_strided_slice %113 {offsets = [0, 384], sizes = [8, 128], strides = [1, 1]} : vector<8x512xf32> to vector<8x128xf32>
    %129 = arith.negf %128 : vector<8x128xf32>
    %130 = math.exp %129 : vector<8x128xf32>
    %cst_31 = arith.constant 1.000000e+00 : f32
    %131 = vector.broadcast %cst_31 : f32 to vector<8x128xf32>
    %132 = arith.addf %131, %130 : vector<8x128xf32>
    %133 = arith.divf %131, %132 : vector<8x128xf32>
    %134 = arith.mulf %125, %106 : vector<8x128xf32>
    %135 = arith.mulf %119, %127 : vector<8x128xf32>
    %136 = arith.addf %134, %135 : vector<8x128xf32>
    %137 = math.tanh %136 : vector<8x128xf32>
    %138 = arith.mulf %133, %137 : vector<8x128xf32>
    %139 = vector.broadcast %108 : i32 to vector<8x1xi32>
    %140 = arith.cmpi sgt, %3, %139 : vector<8x1xi32>
    %141 = arith.extui %140 : vector<8x1xi1> to vector<8x1xi32>
    %142 = arith.sitofp %141 : vector<8x1xi32> to vector<8x1xf32>
    %143 = vector.broadcast %142 : vector<8x1xf32> to vector<8x128xf32>
    %144 = arith.mulf %143, %138 : vector<8x128xf32>
    %cst_32 = arith.constant 1.000000e+00 : f32
    %145 = vector.broadcast %cst_32 : f32 to vector<8x1xf32>
    %146 = arith.subf %145, %142 : vector<8x1xf32>
    %147 = vector.broadcast %146 : vector<8x1xf32> to vector<8x128xf32>
    %148 = arith.mulf %147, %99 : vector<8x128xf32>
    %149 = arith.addf %144, %148 : vector<8x128xf32>
    %150 = vector.broadcast %142 : vector<8x1xf32> to vector<8x128xf32>
    %151 = arith.mulf %150, %136 : vector<8x128xf32>
    %cst_33 = arith.constant 1.000000e+00 : f32
    %152 = vector.broadcast %cst_33 : f32 to vector<8x1xf32>
    %153 = arith.subf %152, %142 : vector<8x1xf32>
    %154 = vector.broadcast %153 : vector<8x1xf32> to vector<8x128xf32>
    %155 = arith.mulf %154, %106 : vector<8x128xf32>
    %156 = arith.addf %151, %155 : vector<8x128xf32>
    %c3_i32 = arith.constant 3 : i32
    %c8_i32_34 = arith.constant 8 : i32
    %157 = arith.muli %arg0, %c8_i32_34 : i32
    %158 = arith.addi %157, %c3_i32 : i32
    %159 = arith.index_cast %c3_i32 : i32 to index
    %c0_35 = arith.constant 0 : index
    %c0_36 = arith.constant 0 : index
    %160 = vector.load %arg2[%159, %c0_35, %c0_36] : memref<8x8x512xf32, #tpu.memory_space<vmem>>, vector<1x8x512xf32>
    %161 = vector.shape_cast %160 : vector<1x8x512xf32> to vector<8x512xf32>
    %cst_37 = arith.constant dense<0.000000e+00> : vector<8x512xf32>
    %162 = tpu.matmul %149, %4, %cst_37 {dimension_numbers = #tpu.dot_dimension_numbers<[1], [0], [0], [1], [0, 0, 1, 1], [], []>} : vector<8x128xf32>, vector<128x512xf32>, vector<8x512xf32> -> vector<8x512xf32>
    %163 = arith.addf %161, %162 : vector<8x512xf32>
    %164 = vector.extract_strided_slice %163 {offsets = [0, 0], sizes = [8, 128], strides = [1, 1]} : vector<8x512xf32> to vector<8x128xf32>
    %165 = arith.negf %164 : vector<8x128xf32>
    %166 = math.exp %165 : vector<8x128xf32>
    %cst_38 = arith.constant 1.000000e+00 : f32
    %167 = vector.broadcast %cst_38 : f32 to vector<8x128xf32>
    %168 = arith.addf %167, %166 : vector<8x128xf32>
    %169 = arith.divf %167, %168 : vector<8x128xf32>
    %170 = vector.extract_strided_slice %163 {offsets = [0, 128], sizes = [8, 128], strides = [1, 1]} : vector<8x512xf32> to vector<8x128xf32>
    %171 = arith.negf %170 : vector<8x128xf32>
    %172 = math.exp %171 : vector<8x128xf32>
    %cst_39 = arith.constant 1.000000e+00 : f32
    %173 = vector.broadcast %cst_39 : f32 to vector<8x128xf32>
    %174 = arith.addf %173, %172 : vector<8x128xf32>
    %175 = arith.divf %173, %174 : vector<8x128xf32>
    %176 = vector.extract_strided_slice %163 {offsets = [0, 256], sizes = [8, 128], strides = [1, 1]} : vector<8x512xf32> to vector<8x128xf32>
    %177 = math.tanh %176 : vector<8x128xf32>
    %178 = vector.extract_strided_slice %163 {offsets = [0, 384], sizes = [8, 128], strides = [1, 1]} : vector<8x512xf32> to vector<8x128xf32>
    %179 = arith.negf %178 : vector<8x128xf32>
    %180 = math.exp %179 : vector<8x128xf32>
    %cst_40 = arith.constant 1.000000e+00 : f32
    %181 = vector.broadcast %cst_40 : f32 to vector<8x128xf32>
    %182 = arith.addf %181, %180 : vector<8x128xf32>
    %183 = arith.divf %181, %182 : vector<8x128xf32>
    %184 = arith.mulf %175, %156 : vector<8x128xf32>
    %185 = arith.mulf %169, %177 : vector<8x128xf32>
    %186 = arith.addf %184, %185 : vector<8x128xf32>
    %187 = math.tanh %186 : vector<8x128xf32>
    %188 = arith.mulf %183, %187 : vector<8x128xf32>
    %189 = vector.broadcast %158 : i32 to vector<8x1xi32>
    %190 = arith.cmpi sgt, %3, %189 : vector<8x1xi32>
    %191 = arith.extui %190 : vector<8x1xi1> to vector<8x1xi32>
    %192 = arith.sitofp %191 : vector<8x1xi32> to vector<8x1xf32>
    %193 = vector.broadcast %192 : vector<8x1xf32> to vector<8x128xf32>
    %194 = arith.mulf %193, %188 : vector<8x128xf32>
    %cst_41 = arith.constant 1.000000e+00 : f32
    %195 = vector.broadcast %cst_41 : f32 to vector<8x1xf32>
    %196 = arith.subf %195, %192 : vector<8x1xf32>
    %197 = vector.broadcast %196 : vector<8x1xf32> to vector<8x128xf32>
    %198 = arith.mulf %197, %149 : vector<8x128xf32>
    %199 = arith.addf %194, %198 : vector<8x128xf32>
    %200 = vector.broadcast %192 : vector<8x1xf32> to vector<8x128xf32>
    %201 = arith.mulf %200, %186 : vector<8x128xf32>
    %cst_42 = arith.constant 1.000000e+00 : f32
    %202 = vector.broadcast %cst_42 : f32 to vector<8x1xf32>
    %203 = arith.subf %202, %192 : vector<8x1xf32>
    %204 = vector.broadcast %203 : vector<8x1xf32> to vector<8x128xf32>
    %205 = arith.mulf %204, %156 : vector<8x128xf32>
    %206 = arith.addf %201, %205 : vector<8x128xf32>
    %c4_i32 = arith.constant 4 : i32
    %c8_i32_43 = arith.constant 8 : i32
    %207 = arith.muli %arg0, %c8_i32_43 : i32
    %208 = arith.addi %207, %c4_i32 : i32
    %209 = arith.index_cast %c4_i32 : i32 to index
    %c0_44 = arith.constant 0 : index
    %c0_45 = arith.constant 0 : index
    %210 = vector.load %arg2[%209, %c0_44, %c0_45] : memref<8x8x512xf32, #tpu.memory_space<vmem>>, vector<1x8x512xf32>
    %211 = vector.shape_cast %210 : vector<1x8x512xf32> to vector<8x512xf32>
    %cst_46 = arith.constant dense<0.000000e+00> : vector<8x512xf32>
    %212 = tpu.matmul %199, %4, %cst_46 {dimension_numbers = #tpu.dot_dimension_numbers<[1], [0], [0], [1], [0, 0, 1, 1], [], []>} : vector<8x128xf32>, vector<128x512xf32>, vector<8x512xf32> -> vector<8x512xf32>
    %213 = arith.addf %211, %212 : vector<8x512xf32>
    %214 = vector.extract_strided_slice %213 {offsets = [0, 0], sizes = [8, 128], strides = [1, 1]} : vector<8x512xf32> to vector<8x128xf32>
    %215 = arith.negf %214 : vector<8x128xf32>
    %216 = math.exp %215 : vector<8x128xf32>
    %cst_47 = arith.constant 1.000000e+00 : f32
    %217 = vector.broadcast %cst_47 : f32 to vector<8x128xf32>
    %218 = arith.addf %217, %216 : vector<8x128xf32>
    %219 = arith.divf %217, %218 : vector<8x128xf32>
    %220 = vector.extract_strided_slice %213 {offsets = [0, 128], sizes = [8, 128], strides = [1, 1]} : vector<8x512xf32> to vector<8x128xf32>
    %221 = arith.negf %220 : vector<8x128xf32>
    %222 = math.exp %221 : vector<8x128xf32>
    %cst_48 = arith.constant 1.000000e+00 : f32
    %223 = vector.broadcast %cst_48 : f32 to vector<8x128xf32>
    %224 = arith.addf %223, %222 : vector<8x128xf32>
    %225 = arith.divf %223, %224 : vector<8x128xf32>
    %226 = vector.extract_strided_slice %213 {offsets = [0, 256], sizes = [8, 128], strides = [1, 1]} : vector<8x512xf32> to vector<8x128xf32>
    %227 = math.tanh %226 : vector<8x128xf32>
    %228 = vector.extract_strided_slice %213 {offsets = [0, 384], sizes = [8, 128], strides = [1, 1]} : vector<8x512xf32> to vector<8x128xf32>
    %229 = arith.negf %228 : vector<8x128xf32>
    %230 = math.exp %229 : vector<8x128xf32>
    %cst_49 = arith.constant 1.000000e+00 : f32
    %231 = vector.broadcast %cst_49 : f32 to vector<8x128xf32>
    %232 = arith.addf %231, %230 : vector<8x128xf32>
    %233 = arith.divf %231, %232 : vector<8x128xf32>
    %234 = arith.mulf %225, %206 : vector<8x128xf32>
    %235 = arith.mulf %219, %227 : vector<8x128xf32>
    %236 = arith.addf %234, %235 : vector<8x128xf32>
    %237 = math.tanh %236 : vector<8x128xf32>
    %238 = arith.mulf %233, %237 : vector<8x128xf32>
    %239 = vector.broadcast %208 : i32 to vector<8x1xi32>
    %240 = arith.cmpi sgt, %3, %239 : vector<8x1xi32>
    %241 = arith.extui %240 : vector<8x1xi1> to vector<8x1xi32>
    %242 = arith.sitofp %241 : vector<8x1xi32> to vector<8x1xf32>
    %243 = vector.broadcast %242 : vector<8x1xf32> to vector<8x128xf32>
    %244 = arith.mulf %243, %238 : vector<8x128xf32>
    %cst_50 = arith.constant 1.000000e+00 : f32
    %245 = vector.broadcast %cst_50 : f32 to vector<8x1xf32>
    %246 = arith.subf %245, %242 : vector<8x1xf32>
    %247 = vector.broadcast %246 : vector<8x1xf32> to vector<8x128xf32>
    %248 = arith.mulf %247, %199 : vector<8x128xf32>
    %249 = arith.addf %244, %248 : vector<8x128xf32>
    %250 = vector.broadcast %242 : vector<8x1xf32> to vector<8x128xf32>
    %251 = arith.mulf %250, %236 : vector<8x128xf32>
    %cst_51 = arith.constant 1.000000e+00 : f32
    %252 = vector.broadcast %cst_51 : f32 to vector<8x1xf32>
    %253 = arith.subf %252, %242 : vector<8x1xf32>
    %254 = vector.broadcast %253 : vector<8x1xf32> to vector<8x128xf32>
    %255 = arith.mulf %254, %206 : vector<8x128xf32>
    %256 = arith.addf %251, %255 : vector<8x128xf32>
    %c5_i32 = arith.constant 5 : i32
    %c8_i32_52 = arith.constant 8 : i32
    %257 = arith.muli %arg0, %c8_i32_52 : i32
    %258 = arith.addi %257, %c5_i32 : i32
    %259 = arith.index_cast %c5_i32 : i32 to index
    %c0_53 = arith.constant 0 : index
    %c0_54 = arith.constant 0 : index
    %260 = vector.load %arg2[%259, %c0_53, %c0_54] : memref<8x8x512xf32, #tpu.memory_space<vmem>>, vector<1x8x512xf32>
    %261 = vector.shape_cast %260 : vector<1x8x512xf32> to vector<8x512xf32>
    %cst_55 = arith.constant dense<0.000000e+00> : vector<8x512xf32>
    %262 = tpu.matmul %249, %4, %cst_55 {dimension_numbers = #tpu.dot_dimension_numbers<[1], [0], [0], [1], [0, 0, 1, 1], [], []>} : vector<8x128xf32>, vector<128x512xf32>, vector<8x512xf32> -> vector<8x512xf32>
    %263 = arith.addf %261, %262 : vector<8x512xf32>
    %264 = vector.extract_strided_slice %263 {offsets = [0, 0], sizes = [8, 128], strides = [1, 1]} : vector<8x512xf32> to vector<8x128xf32>
    %265 = arith.negf %264 : vector<8x128xf32>
    %266 = math.exp %265 : vector<8x128xf32>
    %cst_56 = arith.constant 1.000000e+00 : f32
    %267 = vector.broadcast %cst_56 : f32 to vector<8x128xf32>
    %268 = arith.addf %267, %266 : vector<8x128xf32>
    %269 = arith.divf %267, %268 : vector<8x128xf32>
    %270 = vector.extract_strided_slice %263 {offsets = [0, 128], sizes = [8, 128], strides = [1, 1]} : vector<8x512xf32> to vector<8x128xf32>
    %271 = arith.negf %270 : vector<8x128xf32>
    %272 = math.exp %271 : vector<8x128xf32>
    %cst_57 = arith.constant 1.000000e+00 : f32
    %273 = vector.broadcast %cst_57 : f32 to vector<8x128xf32>
    %274 = arith.addf %273, %272 : vector<8x128xf32>
    %275 = arith.divf %273, %274 : vector<8x128xf32>
    %276 = vector.extract_strided_slice %263 {offsets = [0, 256], sizes = [8, 128], strides = [1, 1]} : vector<8x512xf32> to vector<8x128xf32>
    %277 = math.tanh %276 : vector<8x128xf32>
    %278 = vector.extract_strided_slice %263 {offsets = [0, 384], sizes = [8, 128], strides = [1, 1]} : vector<8x512xf32> to vector<8x128xf32>
    %279 = arith.negf %278 : vector<8x128xf32>
    %280 = math.exp %279 : vector<8x128xf32>
    %cst_58 = arith.constant 1.000000e+00 : f32
    %281 = vector.broadcast %cst_58 : f32 to vector<8x128xf32>
    %282 = arith.addf %281, %280 : vector<8x128xf32>
    %283 = arith.divf %281, %282 : vector<8x128xf32>
    %284 = arith.mulf %275, %256 : vector<8x128xf32>
    %285 = arith.mulf %269, %277 : vector<8x128xf32>
    %286 = arith.addf %284, %285 : vector<8x128xf32>
    %287 = math.tanh %286 : vector<8x128xf32>
    %288 = arith.mulf %283, %287 : vector<8x128xf32>
    %289 = vector.broadcast %258 : i32 to vector<8x1xi32>
    %290 = arith.cmpi sgt, %3, %289 : vector<8x1xi32>
    %291 = arith.extui %290 : vector<8x1xi1> to vector<8x1xi32>
    %292 = arith.sitofp %291 : vector<8x1xi32> to vector<8x1xf32>
    %293 = vector.broadcast %292 : vector<8x1xf32> to vector<8x128xf32>
    %294 = arith.mulf %293, %288 : vector<8x128xf32>
    %cst_59 = arith.constant 1.000000e+00 : f32
    %295 = vector.broadcast %cst_59 : f32 to vector<8x1xf32>
    %296 = arith.subf %295, %292 : vector<8x1xf32>
    %297 = vector.broadcast %296 : vector<8x1xf32> to vector<8x128xf32>
    %298 = arith.mulf %297, %249 : vector<8x128xf32>
    %299 = arith.addf %294, %298 : vector<8x128xf32>
    %300 = vector.broadcast %292 : vector<8x1xf32> to vector<8x128xf32>
    %301 = arith.mulf %300, %286 : vector<8x128xf32>
    %cst_60 = arith.constant 1.000000e+00 : f32
    %302 = vector.broadcast %cst_60 : f32 to vector<8x1xf32>
    %303 = arith.subf %302, %292 : vector<8x1xf32>
    %304 = vector.broadcast %303 : vector<8x1xf32> to vector<8x128xf32>
    %305 = arith.mulf %304, %256 : vector<8x128xf32>
    %306 = arith.addf %301, %305 : vector<8x128xf32>
    %c6_i32 = arith.constant 6 : i32
    %c8_i32_61 = arith.constant 8 : i32
    %307 = arith.muli %arg0, %c8_i32_61 : i32
    %308 = arith.addi %307, %c6_i32 : i32
    %309 = arith.index_cast %c6_i32 : i32 to index
    %c0_62 = arith.constant 0 : index
    %c0_63 = arith.constant 0 : index
    %310 = vector.load %arg2[%309, %c0_62, %c0_63] : memref<8x8x512xf32, #tpu.memory_space<vmem>>, vector<1x8x512xf32>
    %311 = vector.shape_cast %310 : vector<1x8x512xf32> to vector<8x512xf32>
    %cst_64 = arith.constant dense<0.000000e+00> : vector<8x512xf32>
    %312 = tpu.matmul %299, %4, %cst_64 {dimension_numbers = #tpu.dot_dimension_numbers<[1], [0], [0], [1], [0, 0, 1, 1], [], []>} : vector<8x128xf32>, vector<128x512xf32>, vector<8x512xf32> -> vector<8x512xf32>
    %313 = arith.addf %311, %312 : vector<8x512xf32>
    %314 = vector.extract_strided_slice %313 {offsets = [0, 0], sizes = [8, 128], strides = [1, 1]} : vector<8x512xf32> to vector<8x128xf32>
    %315 = arith.negf %314 : vector<8x128xf32>
    %316 = math.exp %315 : vector<8x128xf32>
    %cst_65 = arith.constant 1.000000e+00 : f32
    %317 = vector.broadcast %cst_65 : f32 to vector<8x128xf32>
    %318 = arith.addf %317, %316 : vector<8x128xf32>
    %319 = arith.divf %317, %318 : vector<8x128xf32>
    %320 = vector.extract_strided_slice %313 {offsets = [0, 128], sizes = [8, 128], strides = [1, 1]} : vector<8x512xf32> to vector<8x128xf32>
    %321 = arith.negf %320 : vector<8x128xf32>
    %322 = math.exp %321 : vector<8x128xf32>
    %cst_66 = arith.constant 1.000000e+00 : f32
    %323 = vector.broadcast %cst_66 : f32 to vector<8x128xf32>
    %324 = arith.addf %323, %322 : vector<8x128xf32>
    %325 = arith.divf %323, %324 : vector<8x128xf32>
    %326 = vector.extract_strided_slice %313 {offsets = [0, 256], sizes = [8, 128], strides = [1, 1]} : vector<8x512xf32> to vector<8x128xf32>
    %327 = math.tanh %326 : vector<8x128xf32>
    %328 = vector.extract_strided_slice %313 {offsets = [0, 384], sizes = [8, 128], strides = [1, 1]} : vector<8x512xf32> to vector<8x128xf32>
    %329 = arith.negf %328 : vector<8x128xf32>
    %330 = math.exp %329 : vector<8x128xf32>
    %cst_67 = arith.constant 1.000000e+00 : f32
    %331 = vector.broadcast %cst_67 : f32 to vector<8x128xf32>
    %332 = arith.addf %331, %330 : vector<8x128xf32>
    %333 = arith.divf %331, %332 : vector<8x128xf32>
    %334 = arith.mulf %325, %306 : vector<8x128xf32>
    %335 = arith.mulf %319, %327 : vector<8x128xf32>
    %336 = arith.addf %334, %335 : vector<8x128xf32>
    %337 = math.tanh %336 : vector<8x128xf32>
    %338 = arith.mulf %333, %337 : vector<8x128xf32>
    %339 = vector.broadcast %308 : i32 to vector<8x1xi32>
    %340 = arith.cmpi sgt, %3, %339 : vector<8x1xi32>
    %341 = arith.extui %340 : vector<8x1xi1> to vector<8x1xi32>
    %342 = arith.sitofp %341 : vector<8x1xi32> to vector<8x1xf32>
    %343 = vector.broadcast %342 : vector<8x1xf32> to vector<8x128xf32>
    %344 = arith.mulf %343, %338 : vector<8x128xf32>
    %cst_68 = arith.constant 1.000000e+00 : f32
    %345 = vector.broadcast %cst_68 : f32 to vector<8x1xf32>
    %346 = arith.subf %345, %342 : vector<8x1xf32>
    %347 = vector.broadcast %346 : vector<8x1xf32> to vector<8x128xf32>
    %348 = arith.mulf %347, %299 : vector<8x128xf32>
    %349 = arith.addf %344, %348 : vector<8x128xf32>
    %350 = vector.broadcast %342 : vector<8x1xf32> to vector<8x128xf32>
    %351 = arith.mulf %350, %336 : vector<8x128xf32>
    %cst_69 = arith.constant 1.000000e+00 : f32
    %352 = vector.broadcast %cst_69 : f32 to vector<8x1xf32>
    %353 = arith.subf %352, %342 : vector<8x1xf32>
    %354 = vector.broadcast %353 : vector<8x1xf32> to vector<8x128xf32>
    %355 = arith.mulf %354, %306 : vector<8x128xf32>
    %356 = arith.addf %351, %355 : vector<8x128xf32>
    %c7_i32 = arith.constant 7 : i32
    %c8_i32_70 = arith.constant 8 : i32
    %357 = arith.muli %arg0, %c8_i32_70 : i32
    %358 = arith.addi %357, %c7_i32 : i32
    %359 = arith.index_cast %c7_i32 : i32 to index
    %c0_71 = arith.constant 0 : index
    %c0_72 = arith.constant 0 : index
    %360 = vector.load %arg2[%359, %c0_71, %c0_72] : memref<8x8x512xf32, #tpu.memory_space<vmem>>, vector<1x8x512xf32>
    %361 = vector.shape_cast %360 : vector<1x8x512xf32> to vector<8x512xf32>
    %cst_73 = arith.constant dense<0.000000e+00> : vector<8x512xf32>
    %362 = tpu.matmul %349, %4, %cst_73 {dimension_numbers = #tpu.dot_dimension_numbers<[1], [0], [0], [1], [0, 0, 1, 1], [], []>} : vector<8x128xf32>, vector<128x512xf32>, vector<8x512xf32> -> vector<8x512xf32>
    %363 = arith.addf %361, %362 : vector<8x512xf32>
    %364 = vector.extract_strided_slice %363 {offsets = [0, 0], sizes = [8, 128], strides = [1, 1]} : vector<8x512xf32> to vector<8x128xf32>
    %365 = arith.negf %364 : vector<8x128xf32>
    %366 = math.exp %365 : vector<8x128xf32>
    %cst_74 = arith.constant 1.000000e+00 : f32
    %367 = vector.broadcast %cst_74 : f32 to vector<8x128xf32>
    %368 = arith.addf %367, %366 : vector<8x128xf32>
    %369 = arith.divf %367, %368 : vector<8x128xf32>
    %370 = vector.extract_strided_slice %363 {offsets = [0, 128], sizes = [8, 128], strides = [1, 1]} : vector<8x512xf32> to vector<8x128xf32>
    %371 = arith.negf %370 : vector<8x128xf32>
    %372 = math.exp %371 : vector<8x128xf32>
    %cst_75 = arith.constant 1.000000e+00 : f32
    %373 = vector.broadcast %cst_75 : f32 to vector<8x128xf32>
    %374 = arith.addf %373, %372 : vector<8x128xf32>
    %375 = arith.divf %373, %374 : vector<8x128xf32>
    %376 = vector.extract_strided_slice %363 {offsets = [0, 256], sizes = [8, 128], strides = [1, 1]} : vector<8x512xf32> to vector<8x128xf32>
    %377 = math.tanh %376 : vector<8x128xf32>
    %378 = vector.extract_strided_slice %363 {offsets = [0, 384], sizes = [8, 128], strides = [1, 1]} : vector<8x512xf32> to vector<8x128xf32>
    %379 = arith.negf %378 : vector<8x128xf32>
    %380 = math.exp %379 : vector<8x128xf32>
    %cst_76 = arith.constant 1.000000e+00 : f32
    %381 = vector.broadcast %cst_76 : f32 to vector<8x128xf32>
    %382 = arith.addf %381, %380 : vector<8x128xf32>
    %383 = arith.divf %381, %382 : vector<8x128xf32>
    %384 = arith.mulf %375, %356 : vector<8x128xf32>
    %385 = arith.mulf %369, %377 : vector<8x128xf32>
    %386 = arith.addf %384, %385 : vector<8x128xf32>
    %387 = math.tanh %386 : vector<8x128xf32>
    %388 = arith.mulf %383, %387 : vector<8x128xf32>
    %389 = vector.broadcast %358 : i32 to vector<8x1xi32>
    %390 = arith.cmpi sgt, %3, %389 : vector<8x1xi32>
    %391 = arith.extui %390 : vector<8x1xi1> to vector<8x1xi32>
    %392 = arith.sitofp %391 : vector<8x1xi32> to vector<8x1xf32>
    %393 = vector.broadcast %392 : vector<8x1xf32> to vector<8x128xf32>
    %394 = arith.mulf %393, %388 : vector<8x128xf32>
    %cst_77 = arith.constant 1.000000e+00 : f32
    %395 = vector.broadcast %cst_77 : f32 to vector<8x1xf32>
    %396 = arith.subf %395, %392 : vector<8x1xf32>
    %397 = vector.broadcast %396 : vector<8x1xf32> to vector<8x128xf32>
    %398 = arith.mulf %397, %349 : vector<8x128xf32>
    %399 = arith.addf %394, %398 : vector<8x128xf32>
    %400 = vector.broadcast %392 : vector<8x1xf32> to vector<8x128xf32>
    %401 = arith.mulf %400, %386 : vector<8x128xf32>
    %cst_78 = arith.constant 1.000000e+00 : f32
    %402 = vector.broadcast %cst_78 : f32 to vector<8x1xf32>
    %403 = arith.subf %402, %392 : vector<8x1xf32>
    %404 = vector.broadcast %403 : vector<8x1xf32> to vector<8x128xf32>
    %405 = arith.mulf %404, %356 : vector<8x128xf32>
    %406 = arith.addf %401, %405 : vector<8x128xf32>
    %c8_i32_79 = arith.constant 8 : i32
    %c0_80 = arith.constant 0 : index
    %c0_81 = arith.constant 0 : index
    %407 = vector.load %arg6[%c0_80, %c0_81] : memref<8x128xf32, #tpu.memory_space<vmem>>, vector<8x128xf32>
    tpu.vector_store %arg6[%c0_80, %c0_81], %399 {strides = array<i32>} : memref<8x128xf32, #tpu.memory_space<vmem>>, vector<8x128xf32>,
    %c0_82 = arith.constant 0 : index
    %c0_83 = arith.constant 0 : index
    %408 = vector.load %arg7[%c0_82, %c0_83] : memref<8x128xf32, #tpu.memory_space<vmem>>, vector<8x128xf32>
    tpu.vector_store %arg7[%c0_82, %c0_83], %406 {strides = array<i32>} : memref<8x128xf32, #tpu.memory_space<vmem>>, vector<8x128xf32>,
    %c0_i32_84 = arith.constant 0 : i32
    %409 = arith.cmpi eq, %arg0, %c0_i32_84 : i32
    %410 = arith.extui %409 : i1 to i32
    %c0_i32_85 = arith.constant 0 : i32
    %411 = arith.cmpi ne, %410, %c0_i32_85 : i32
    scf.if %411 {
      %c0_86 = arith.constant 0 : index
      %c0_87 = arith.constant 0 : index
      %412 = vector.load %arg4[%c0_86, %c0_87] : memref<8x128xf32, #tpu.memory_space<vmem>>, vector<8x128xf32>
      tpu.vector_store %arg4[%c0_86, %c0_87], %399 {strides = array<i32>} : memref<8x128xf32, #tpu.memory_space<vmem>>, vector<8x128xf32>,
      %c0_88 = arith.constant 0 : index
      %c0_89 = arith.constant 0 : index
      %413 = vector.load %arg5[%c0_88, %c0_89] : memref<8x128xf32, #tpu.memory_space<vmem>>, vector<8x128xf32>
      tpu.vector_store %arg5[%c0_88, %c0_89], %406 {strides = array<i32>} : memref<8x128xf32, #tpu.memory_space<vmem>>, vector<8x128xf32>,
    } else {
    }
    return
  }
  func.func @transform_0(%arg0: i32) -> (i32, i32) {
    %c0_i32 = arith.constant 0 : i32
    %c0_i32_0 = arith.constant 0 : i32
    %c0_i32_1 = arith.constant 0 : i32
    return %c0_i32, %c0_i32_0 : i32, i32
  }
  func.func @transform_1(%arg0: i32) -> (i32, i32, i32) {
    %c0_i32 = arith.constant 0 : i32
    %c0_i32_0 = arith.constant 0 : i32
    %c0_i32_1 = arith.constant 0 : i32
    return %arg0, %c0_i32, %c0_i32_0 : i32, i32, i32
  }
  func.func @transform_2(%arg0: i32) -> (i32, i32) {
    %c0_i32 = arith.constant 0 : i32
    %c0_i32_0 = arith.constant 0 : i32
    %c0_i32_1 = arith.constant 0 : i32
    return %c0_i32, %c0_i32_0 : i32, i32
  }
  func.func @transform_3(%arg0: i32) -> (i32, i32) {
    %c0_i32 = arith.constant 0 : i32
    %c0_i32_0 = arith.constant 0 : i32
    %c0_i32_1 = arith.constant 0 : i32
    return %c0_i32, %c0_i32_0 : i32, i32
  }
  func.func @transform_4(%arg0: i32) -> (i32, i32) {
    %c0_i32 = arith.constant 0 : i32
    %c0_i32_0 = arith.constant 0 : i32
    %c0_i32_1 = arith.constant 0 : i32
    return %c0_i32, %c0_i32_0 : i32, i32
  }
}

</mosaic_0001>

<llo_original>
// kernel: tpu_custom_call.1
$region0: #{tpu_custom_call.1}
  #allocation0 [shape = 'u32[]', space=smem, size = 0x4, offset = 0x4, fixed_abs, tag = 'smem constant byte address 0x4 - core index']
  #allocation1 [shape = 'u32[144,128]{1,0:T(1,128)}', space=vmem, size = 0x12000, scoped, tag = 'internal scratch']
  #allocation2 [shape = 'f32[8,128]{1,0:T(8,128)}', space=vmem, size = 0x1000, scoped, tag = 'scratch operand']
  #allocation3 [shape = 'f32[8,128]{1,0:T(8,128)}', space=vmem, size = 0x1000, scoped, tag = 'scratch operand']
  %s0 = inlined_call_operand.vmem [shape: s32[8,1], index: 0, kind: input, shape index: {}]
  %s1 = inlined_call_operand.hbm [shape: f32[8,8,512], index: 1, kind: input, shape index: {}]
  %s2 = inlined_call_operand.hbm [shape: f32[128,512], index: 2, kind: input, shape index: {}]
  %s3 = inlined_call_operand.hbm [shape: f32[8,128], index: 3, kind: output, shape index: {0}]
  %s4 = inlined_call_operand.hbm [shape: f32[8,128], index: 4, kind: output, shape index: {1}]
  %5 = xla_tuple %s3, %s4
  %s6 = sld [smem:[#allocation0]]
  $region46: #{tpu_custom_call.1} parent=0
    _
  %s8 = ssub.s32 1, %s6
  %s9 = scalar_select 0, %s8, %s6
  $region1: #{tpu_custom_call.1} parent=0
    #allocation4 [shape = 'u8[131072]{0}', space=vmem, size = 0x20000, scoped, tag = 'input window, operand 1, single buffered']
    #allocation5 [shape = 's32[1]{0}', space=sflag, size = 0x4, scoped, tag = 'scoped memory for tpu_custom_call.1']
    #allocation6 [shape = 's32[1]{0}', space=sflag, size = 0x4, scoped, tag = 'scoped memory for tpu_custom_call.1']
    #allocation7 [shape = 'u8[262144]{0}', space=vmem, size = 0x40000, scoped, tag = 'input window, operand 2, single buffered']
    #allocation8 [shape = 's32[1]{0}', space=sflag, size = 0x4, scoped, tag = 'scoped memory for tpu_custom_call.1']
    #allocation9 [shape = 'u8[4096]{0}', space=vmem, size = 0x1000, scoped, tag = 'output window, operand 0, single buffered']
    #allocation10 [shape = 'u8[4096]{0}', space=vmem, size = 0x1000, scoped, tag = 'output window, operand 1, single buffered']
    #allocation11 [shape = 's32[1]{0}', space=sflag, size = 0x4, scoped, tag = 'scoped memory for tpu_custom_call.1']
    %10 = vsyncpa [#allocation5], 0
    %11 = vsyncpa [#allocation8], 0
    %12 = vsyncpa [#allocation6], 0
    %13 = vsyncpa [#allocation11], 0
    // Predicated region
    $region2: #{tpu_custom_call.1} parent=1 // pred_check
      _
    $region3: #{tpu_custom_call.1} parent=1 // pred_check_branch
      %15 = sbr.rel (0) target = $region5
    $region4: #{tpu_custom_call.1} parent=1 // pred_region
      _
    $region5: #{tpu_custom_call.1} parent=1 // pred_fallthru
      _
    // Predicated region
    $region6: #{tpu_custom_call.1} parent=1 // pred_check
      _
    $region7: #{tpu_custom_call.1} parent=1 // pred_check_branch
      %17 = sbr.rel (0) target = $region9
    $region8: #{tpu_custom_call.1} parent=1 // pred_region
      %s19 = ssub.s32 4096, 4096
      %20 = vsyncadd [#allocation5], %s19
      %s21 = sshll.u32 [#allocation4], 4
      %s22 = int_to_ptr.vmem [resolvable:$true] %s21
      %27 = dma.hbm_to_vmem [thread:$0]  %s1, 4096, %s22, [#allocation5], 512, 512, 32
    $region9: #{tpu_custom_call.1} parent=1 // pred_fallthru
      _
    // Predicated region
    $region10: #{tpu_custom_call.1} parent=1 // pred_check
      _
    $region11: #{tpu_custom_call.1} parent=1 // pred_check_branch
      %29 = sbr.rel (0) target = $region13
    $region12: #{tpu_custom_call.1} parent=1 // pred_region
      %s31 = ssub.s32 8192, 8192
      %32 = vsyncadd [#allocation8], %s31
      %s33 = sshll.u32 [#allocation7], 4
      %s34 = int_to_ptr.vmem [resolvable:$true] %s33
      %39 = dma.hbm_to_vmem [thread:$0]  %s2, 8192, %s34, [#allocation8], 512, 512, 32
    $region13: #{tpu_custom_call.1} parent=1 // pred_fallthru
      _
    // Predicated region
    $region14: #{tpu_custom_call.1} parent=1 // pred_check
      _
    $region15: #{tpu_custom_call.1} parent=1 // pred_check_branch
      %41 = sbr.rel (0) target = $region17
    $region16: #{tpu_custom_call.1} parent=1 // pred_region
      %42 = dma.done [#allocation5], 4096
    $region17: #{tpu_custom_call.1} parent=1 // pred_fallthru
      _
    // Predicated region
    $region18: #{tpu_custom_call.1} parent=1 // pred_check
      _
    $region19: #{tpu_custom_call.1} parent=1 // pred_check_branch
      %44 = sbr.rel (0) target = $region21
    $region20: #{tpu_custom_call.1} parent=1 // pred_region
      %45 = dma.done [#allocation8], 8192
    $region21: #{tpu_custom_call.1} parent=1 // pred_fallthru
      _
    %p46 = scmp.eq.s32.totalorder 0, 0
    // Predicated region
    $region22: #{tpu_custom_call.1} parent=1 // pred_check
      %p47 = pneg %p46
    $region23: #{tpu_custom_call.1} parent=1 // pred_check_branch
      %49 = sbr.rel (%p47) target = $region25
    $region24: #{tpu_custom_call.1} parent=1 // pred_region
      %50 = vst [vmem:[#allocation2] sm:$0xff] 0.0
      %51 = vst [vmem:[#allocation3] sm:$0xff] 0.0
    $region25: #{tpu_custom_call.1} parent=1 // pred_fallthru
      _
    %v52 = vld [vmem:[%s0] sm:$0xff]
    %v53 = vld [vmem:[#allocation7] sm:$0xff]
    %v54 = vld [vmem:[#allocation7 + $0x8] sm:$0xff]
    %v55 = vld [vmem:[#allocation7 + $0x10] sm:$0xff]
    %v56 = vld [vmem:[#allocation7 + $0x18] sm:$0xff]
    %v57 = vld [vmem:[#allocation7 + $0x20] sm:$0xff]
    %v58 = vld [vmem:[#allocation7 + $0x28] sm:$0xff]
    %v59 = vld [vmem:[#allocation7 + $0x30] sm:$0xff]
    %v60 = vld [vmem:[#allocation7 + $0x38] sm:$0xff]
    %v61 = vld [vmem:[#allocation7 + $0x40] sm:$0xff]
    %v62 = vld [vmem:[#allocation7 + $0x48] sm:$0xff]
    %v63 = vld [vmem:[#allocation7 + $0x50] sm:$0xff]
    %v64 = vld [vmem:[#allocation7 + $0x58] sm:$0xff]
    %v65 = vld [vmem:[#allocation7 + $0x60] sm:$0xff]
    %v66 = vld [vmem:[#allocation7 + $0x68] sm:$0xff]
    %v67 = vld [vmem:[#allocation7 + $0x70] sm:$0xff]
    %v68 = vld [vmem:[#allocation7 + $0x78] sm:$0xff]
    %v69 = vld [vmem:[#allocation7 + $0x80] sm:$0xff]
    %v70 = vld [vmem:[#allocation7 + $0x88] sm:$0xff]
    %v71 = vld [vmem:[#allocation7 + $0x90] sm:$0xff]
    %v72 = vld [vmem:[#allocation7 + $0x98] sm:$0xff]
    %v73 = vld [vmem:[#allocation7 + $0xa0] sm:$0xff]
    %v74 = vld [vmem:[#allocation7 + $0xa8] sm:$0xff]
    %v75 = vld [vmem:[#allocation7 + $0xb0] sm:$0xff]
    %v76 = vld [vmem:[#allocation7 + $0xb8] sm:$0xff]
    %v77 = vld [vmem:[#allocation7 + $0xc0] sm:$0xff]
    %v78 = vld [vmem:[#allocation7 + $0xc8] sm:$0xff]
    %v79 = vld [vmem:[#allocation7 + $0xd0] sm:$0xff]
    %v80 = vld [vmem:[#allocation7 + $0xd8] sm:$0xff]
    %v81 = vld [vmem:[#allocation7 + $0xe0] sm:$0xff]
    %v82 = vld [vmem:[#allocation7 + $0xe8] sm:$0xff]
    %v83 = vld [vmem:[#allocation7 + $0xf0] sm:$0xff]
    %v84 = vld [vmem:[#allocation7 + $0xf8] sm:$0xff]
    %v85 = vld [vmem:[#allocation7 + $0x100] sm:$0xff]
    %v86 = vld [vmem:[#allocation7 + $0x108] sm:$0xff]
    %v87 = vld [vmem:[#allocation7 + $0x110] sm:$0xff]
    %v88 = vld [vmem:[#allocation7 + $0x118] sm:$0xff]
    %v89 = vld [vmem:[#allocation7 + $0x120] sm:$0xff]
    %v90 = vld [vmem:[#allocation7 + $0x128] sm:$0xff]
    %v91 = vld [vmem:[#allocation7 + $0x130] sm:$0xff]
    %v92 = vld [vmem:[#allocation7 + $0x138] sm:$0xff]
    %v93 = vld [vmem:[#allocation7 + $0x140] sm:$0xff]
    %v94 = vld [vmem:[#allocation7 + $0x148] sm:$0xff]
    %v95 = vld [vmem:[#allocation7 + $0x150] sm:$0xff]
    %v96 = vld [vmem:[#allocation7 + $0x158] sm:$0xff]
    %v97 = vld [vmem:[#allocation7 + $0x160] sm:$0xff]
    %v98 = vld [vmem:[#allocation7 + $0x168] sm:$0xff]
    %v99 = vld [vmem:[#allocation7 + $0x170] sm:$0xff]
    %v100 = vld [vmem:[#allocation7 + $0x178] sm:$0xff]
    %v101 = vld [vmem:[#allocation7 + $0x180] sm:$0xff]
    %v102 = vld [vmem:[#allocation7 + $0x188] sm:$0xff]
    %v103 = vld [vmem:[#allocation7 + $0x190] sm:$0xff]
    %v104 = vld [vmem:[#allocation7 + $0x198] sm:$0xff]
    %v105 = vld [vmem:[#allocation7 + $0x1a0] sm:$0xff]
    %v106 = vld [vmem:[#allocation7 + $0x1a8] sm:$0xff]
    %v107 = vld [vmem:[#allocation7 + $0x1b0] sm:$0xff]
    %v108 = vld [vmem:[#allocation7 + $0x1b8] sm:$0xff]
    %v109 = vld [vmem:[#allocation7 + $0x1c0] sm:$0xff]
    %v110 = vld [vmem:[#allocation7 + $0x1c8] sm:$0xff]
    %v111 = vld [vmem:[#allocation7 + $0x1d0] sm:$0xff]
    %v112 = vld [vmem:[#allocation7 + $0x1d8] sm:$0xff]
    %v113 = vld [vmem:[#allocation7 + $0x1e0] sm:$0xff]
    %v114 = vld [vmem:[#allocation7 + $0x1e8] sm:$0xff]
    %v115 = vld [vmem:[#allocation7 + $0x1f0] sm:$0xff]
    %v116 = vld [vmem:[#allocation7 + $0x1f8] sm:$0xff]
    %v117 = vld [vmem:[#allocation2] sm:$0xff]
    %v118 = vld [vmem:[#allocation3] sm:$0xff]
    %s119 = smul.u32 0, 8
    %v120 = vld [vmem:[#allocation4] sm:$0xff]
    %v121 = vld [vmem:[#allocation4 + $0x8] sm:$0xff]
    %v122 = vld [vmem:[#allocation4 + $0x10] sm:$0xff]
    %v123 = vld [vmem:[#allocation4 + $0x18] sm:$0xff]
    %124 = vmatprep.subr.mxu0 %v114
    %125 = vmatpush1.msra.mxu0 %v113
    %126 = vmatprep.subr.mxu0 %v110
    %127 = vmatpush1.msra.mxu0 %v109
    %128 = vmatprep.subr.mxu0 %v106
    %129 = vmatpush1.msra.mxu0 %v105
    %130 = vmatprep.subr.mxu0 %v102
    %131 = vmatpush1.msra.mxu0 %v101
    %132 = vmatprep.subr.mxu0 %v98
    %133 = vmatpush1.msra.mxu0 %v97
    %134 = vmatprep.subr.mxu0 %v94
    %135 = vmatpush1.msra.mxu0 %v93
    %136 = vmatprep.subr.mxu0 %v90
    %137 = vmatpush1.msra.mxu0 %v89
    %138 = vmatprep.subr.mxu0 %v86
    %139 = vmatpush1.msra.mxu0 %v85
    %140 = vmatprep.subr.mxu0 %v82
    %141 = vmatpush1.msra.mxu0 %v81
    %142 = vmatprep.subr.mxu0 %v78
    %143 = vmatpush1.msra.mxu0 %v77
    %144 = vmatprep.subr.mxu0 %v74
    %145 = vmatpush1.msra.mxu0 %v73
    %146 = vmatprep.subr.mxu0 %v70
    %147 = vmatpush1.msra.mxu0 %v69
    %148 = vmatprep.subr.mxu0 %v66
    %149 = vmatpush1.msra.mxu0 %v65
    %150 = vmatprep.subr.mxu0 %v62
    %151 = vmatpush1.msra.mxu0 %v61
    %152 = vmatprep.subr.mxu0 %v58
    %153 = vmatpush1.msra.mxu0 %v57
    %154 = vmatprep.subr.mxu0 %v54
    %155 = vmatpush1.msra.mxu0 %v53
    %156 = vmatprep.subr.mxu0 0.0
    %157 = vmatpush2.msra.mxu0 0.0
    %158 = vmatprep.subr.mxu0 0.0
    %159 = vmatpush2.msra.mxu0 0.0
    %160 = vmatprep.subr.mxu0 0.0
    %161 = vmatpush2.msra.mxu0 0.0
    %162 = vmatprep.subr.mxu0 0.0
    %163 = vmatpush2.msra.mxu0 0.0
    %164 = vmatprep.subr.mxu0 0.0
    %165 = vmatpush2.msra.mxu0 0.0
    %166 = vmatprep.subr.mxu0 0.0
    %167 = vmatpush2.msra.mxu0 0.0
    %168 = vmatprep.subr.mxu0 0.0
    %169 = vmatpush2.msra.mxu0 0.0
    %170 = vmatprep.subr.mxu0 0.0
    %171 = vmatpush2.msra.mxu0 0.0
    %172 = vmatprep.subr.mxu0 0.0
    %173 = vmatpush2.msra.mxu0 0.0
    %174 = vmatprep.subr.mxu0 0.0
    %175 = vmatpush2.msra.mxu0 0.0
    %176 = vmatprep.subr.mxu0 0.0
    %177 = vmatpush2.msra.mxu0 0.0
    %178 = vmatprep.subr.mxu0 0.0
    %179 = vmatpush2.msra.mxu0 0.0
    %180 = vmatprep.subr.mxu0 0.0
    %181 = vmatpush2.msra.mxu0 0.0
    %182 = vmatprep.subr.mxu0 0.0
    %183 = vmatpush2.msra.mxu0 0.0
    %184 = vmatprep.subr.mxu0 0.0
    %185 = vmatpush2.msra.mxu0 0.0
    %186 = vmatprep.subr.mxu0 0.0
    %187 = vmatpush2.msra.mxu0 0.0
    %188 = vmatprep.mubr.f32.mxu0 0.0
    %189 = vmatmul.mubr.f32.gmra.mxu0 %v117
    %v190 = vpop.f32.mrf.mxu0
    %v191 = vadd.f32 0.0, %v190
    %v192 = vpop.f32.mrf.mxu0
    %v193 = vadd.f32 0.0, %v192
    %194 = vdwg.mxu0
    %195 = vmatprep.subr.mxu0 %v116
    %196 = vmatpush1.msra.mxu0 %v115
    %197 = vmatprep.subr.mxu0 %v112
    %198 = vmatpush1.msra.mxu0 %v111
    %199 = vmatprep.subr.mxu0 %v108
    %200 = vmatpush1.msra.mxu0 %v107
    %201 = vmatprep.subr.mxu0 %v104
    %202 = vmatpush1.msra.mxu0 %v103
    %203 = vmatprep.subr.mxu0 %v100
    %204 = vmatpush1.msra.mxu0 %v99
    %205 = vmatprep.subr.mxu0 %v96
    %206 = vmatpush1.msra.mxu0 %v95
    %207 = vmatprep.subr.mxu0 %v92
    %208 = vmatpush1.msra.mxu0 %v91
    %209 = vmatprep.subr.mxu0 %v88
    %210 = vmatpush1.msra.mxu0 %v87
    %211 = vmatprep.subr.mxu0 %v84
    %212 = vmatpush1.msra.mxu0 %v83
    %213 = vmatprep.subr.mxu0 %v80
    %214 = vmatpush1.msra.mxu0 %v79
    %215 = vmatprep.subr.mxu0 %v76
    %216 = vmatpush1.msra.mxu0 %v75
    %217 = vmatprep.subr.mxu0 %v72
    %218 = vmatpush1.msra.mxu0 %v71
    %219 = vmatprep.subr.mxu0 %v68
    %220 = vmatpush1.msra.mxu0 %v67
    %221 = vmatprep.subr.mxu0 %v64
    %222 = vmatpush1.msra.mxu0 %v63
    %223 = vmatprep.subr.mxu0 %v60
    %224 = vmatpush1.msra.mxu0 %v59
    %225 = vmatprep.subr.mxu0 %v56
    %226 = vmatpush1.msra.mxu0 %v55
    %227 = vmatprep.subr.mxu0 0.0
    %228 = vmatpush2.msra.mxu0 0.0
    %229 = vmatprep.subr.mxu0 0.0
    %230 = vmatpush2.msra.mxu0 0.0
    %231 = vmatprep.subr.mxu0 0.0
    %232 = vmatpush2.msra.mxu0 0.0
    %233 = vmatprep.subr.mxu0 0.0
    %234 = vmatpush2.msra.mxu0 0.0
    %235 = vmatprep.subr.mxu0 0.0
    %236 = vmatpush2.msra.mxu0 0.0
    %237 = vmatprep.subr.mxu0 0.0
    %238 = vmatpush2.msra.mxu0 0.0
    %239 = vmatprep.subr.mxu0 0.0
    %240 = vmatpush2.msra.mxu0 0.0
    %241 = vmatprep.subr.mxu0 0.0
    %242 = vmatpush2.msra.mxu0 0.0
    %243 = vmatprep.subr.mxu0 0.0
    %244 = vmatpush2.msra.mxu0 0.0
    %245 = vmatprep.subr.mxu0 0.0
    %246 = vmatpush2.msra.mxu0 0.0
    %247 = vmatprep.subr.mxu0 0.0
    %248 = vmatpush2.msra.mxu0 0.0
    %249 = vmatprep.subr.mxu0 0.0
    %250 = vmatpush2.msra.mxu0 0.0
    %251 = vmatprep.subr.mxu0 0.0
    %252 = vmatpush2.msra.mxu0 0.0
    %253 = vmatprep.subr.mxu0 0.0
    %254 = vmatpush2.msra.mxu0 0.0
    %255 = vmatprep.subr.mxu0 0.0
    %256 = vmatpush2.msra.mxu0 0.0
    %257 = vmatprep.subr.mxu0 0.0
    %258 = vmatpush2.msra.mxu0 0.0
    %259 = vmatprep.mubr.f32.mxu0 0.0
    %260 = vmatmul.mubr.f32.gmra.mxu0 %v117
    %v261 = vpop.f32.mrf.mxu0
    %v262 = vadd.f32 0.0, %v261
    %v263 = vpop.f32.mrf.mxu0
    %v264 = vadd.f32 0.0, %v263
    %265 = vdwg.mxu0
    %v266 = vadd.f32 %v120, %v191
    %v267 = vadd.f32 %v121, %v193
    %v268 = vadd.f32 %v122, %v262
    %v269 = vadd.f32 %v123, %v264
    %v270 = vxor.u32 %v266, 2147483648
    %v271 = vmul.f32 %v270, 1.442695
    %v272 = vpow.pop %v271
    %v273 = vadd.f32 %v272, 1.0
    %v274 = vrcp.pop %v273
    %v275 = vmul.f32 1.0, %v274
    %v276 = vxor.u32 %v267, 2147483648
    %v277 = vmul.f32 %v276, 1.442695
    %v278 = vpow.pop %v277
    %v279 = vadd.f32 %v278, 1.0
    %v280 = vrcp.pop %v279
    %v281 = vmul.f32 1.0, %v280
    %v282 = vtanh.pop %v268
    %v283 = vxor.u32 %v269, 2147483648
    %v284 = vmul.f32 %v283, 1.442695
    %v285 = vpow.pop %v284
    %v286 = vadd.f32 %v285, 1.0
    %v287 = vrcp.pop %v286
    %v288 = vmul.f32 1.0, %v287
    %v289 = vmul.f32 %v281, %v118
    %v290 = vmul.f32 %v275, %v282
    %v291 = vadd.f32 %v289, %v290
    %v292 = vtanh.pop %v291
    %v293 = vmul.f32 %v288, %v292
    %v294 = vstv %s119
    %vm295 = vcmp.gt.s32.totalorder %v52, %v294
    %v296 = vsel %vm295, 1, 0
    %v297 = vcvt.s32.f32 %v296
    %299 = vset.pattern.permute.xlu0 0
    %300 = vperm.xlu0 %299, %v297
    %v301 = vpop.permute.xlu0 %300
    %v303 = vmul.f32 %v301, %v293
    %v304 = vsub.f32 1.0, %v297
    %306 = vset.pattern.permute.xlu0 0
    %307 = vperm.xlu0 %306, %v304
    %v308 = vpop.permute.xlu0 %307
    %v310 = vmul.f32 %v308, %v117
    %v311 = vadd.f32 %v303, %v310
    %v312 = vmul.f32 %v301, %v291
    %v313 = vmul.f32 %v308, %v118
    %v314 = vadd.f32 %v312, %v313
    %s315 = sadd.s32 %s119, 1
    %s316 = scalar_lea.vmem [#allocation4], 32
    %v317 = vld [vmem:[%s316] sm:$0xff]
    %v318 = vld [vmem:[%s316 + $0x8] sm:$0xff]
    %v319 = vld [vmem:[%s316 + $0x10] sm:$0xff]
    %v320 = vld [vmem:[%s316 + $0x18] sm:$0xff]
    %321 = vmatprep.subr.mxu0 %v114
    %322 = vmatpush1.msra.mxu0 %v113
    %323 = vmatprep.subr.mxu0 %v110
    %324 = vmatpush1.msra.mxu0 %v109
    %325 = vmatprep.subr.mxu0 %v106
    %326 = vmatpush1.msra.mxu0 %v105
    %327 = vmatprep.subr.mxu0 %v102
    %328 = vmatpush1.msra.mxu0 %v101
    %329 = vmatprep.subr.mxu0 %v98
    %330 = vmatpush1.msra.mxu0 %v97
    %331 = vmatprep.subr.mxu0 %v94
    %332 = vmatpush1.msra.mxu0 %v93
    %333 = vmatprep.subr.mxu0 %v90
    %334 = vmatpush1.msra.mxu0 %v89
    %335 = vmatprep.subr.mxu0 %v86
    %336 = vmatpush1.msra.mxu0 %v85
    %337 = vmatprep.subr.mxu0 %v82
    %338 = vmatpush1.msra.mxu0 %v81
    %339 = vmatprep.subr.mxu0 %v78
    %340 = vmatpush1.msra.mxu0 %v77
    %341 = vmatprep.subr.mxu0 %v74
    %342 = vmatpush1.msra.mxu0 %v73
    %343 = vmatprep.subr.mxu0 %v70
    %344 = vmatpush1.msra.mxu0 %v69
    %345 = vmatprep.subr.mxu0 %v66
    %346 = vmatpush1.msra.mxu0 %v65
    %347 = vmatprep.subr.mxu0 %v62
    %348 = vmatpush1.msra.mxu0 %v61
    %349 = vmatprep.subr.mxu0 %v58
    %350 = vmatpush1.msra.mxu0 %v57
    %351 = vmatprep.subr.mxu0 %v54
    %352 = vmatpush1.msra.mxu0 %v53
    %353 = vmatprep.subr.mxu0 0.0
    %354 = vmatpush2.msra.mxu0 0.0
    %355 = vmatprep.subr.mxu0 0.0
    %356 = vmatpush2.msra.mxu0 0.0
    %357 = vmatprep.subr.mxu0 0.0
    %358 = vmatpush2.msra.mxu0 0.0
    %359 = vmatprep.subr.mxu0 0.0
    %360 = vmatpush2.msra.mxu0 0.0
    %361 = vmatprep.subr.mxu0 0.0
    %362 = vmatpush2.msra.mxu0 0.0
    %363 = vmatprep.subr.mxu0 0.0
    %364 = vmatpush2.msra.mxu0 0.0
    %365 = vmatprep.subr.mxu0 0.0
    %366 = vmatpush2.msra.mxu0 0.0
    %367 = vmatprep.subr.mxu0 0.0
    %368 = vmatpush2.msra.mxu0 0.0
    %369 = vmatprep.subr.mxu0 0.0
    %370 = vmatpush2.msra.mxu0 0.0
    %371 = vmatprep.subr.mxu0 0.0
    %372 = vmatpush2.msra.mxu0 0.0
    %373 = vmatprep.subr.mxu0 0.0
    %374 = vmatpush2.msra.mxu0 0.0
    %375 = vmatprep.subr.mxu0 0.0
    %376 = vmatpush2.msra.mxu0 0.0
    %377 = vmatprep.subr.mxu0 0.0
    %378 = vmatpush2.msra.mxu0 0.0
    %379 = vmatprep.subr.mxu0 0.0
    %380 = vmatpush2.msra.mxu0 0.0
    %381 = vmatprep.subr.mxu0 0.0
    %382 = vmatpush2.msra.mxu0 0.0
    %383 = vmatprep.subr.mxu0 0.0
    %384 = vmatpush2.msra.mxu0 0.0
    %385 = vmatprep.mubr.f32.mxu0 0.0
    %386 = vmatmul.mubr.f32.gmra.mxu0 %v311
    %v387 = vpop.f32.mrf.mxu0
    %v388 = vadd.f32 0.0, %v387
    %v389 = vpop.f32.mrf.mxu0
    %v390 = vadd.f32 0.0, %v389
    %391 = vdwg.mxu0
    %392 = vmatprep.subr.mxu0 %v116
    %393 = vmatpush1.msra.mxu0 %v115
    %394 = vmatprep.subr.mxu0 %v112
    %395 = vmatpush1.msra.mxu0 %v111
    %396 = vmatprep.subr.mxu0 %v108
    %397 = vmatpush1.msra.mxu0 %v107
    %398 = vmatprep.subr.mxu0 %v104
    %399 = vmatpush1.msra.mxu0 %v103
    %400 = vmatprep.subr.mxu0 %v100
    %401 = vmatpush1.msra.mxu0 %v99
    %402 = vmatprep.subr.mxu0 %v96
    %403 = vmatpush1.msra.mxu0 %v95
    %404 = vmatprep.subr.mxu0 %v92
    %405 = vmatpush1.msra.mxu0 %v91
    %406 = vmatprep.subr.mxu0 %v88
    %407 = vmatpush1.msra.mxu0 %v87
    %408 = vmatprep.subr.mxu0 %v84
    %409 = vmatpush1.msra.mxu0 %v83
    %410 = vmatprep.subr.mxu0 %v80
    %411 = vmatpush1.msra.mxu0 %v79
    %412 = vmatprep.subr.mxu0 %v76
    %413 = vmatpush1.msra.mxu0 %v75
    %414 = vmatprep.subr.mxu0 %v72
    %415 = vmatpush1.msra.mxu0 %v71
    %416 = vmatprep.subr.mxu0 %v68
    %417 = vmatpush1.msra.mxu0 %v67
    %418 = vmatprep.subr.mxu0 %v64
    %419 = vmatpush1.msra.mxu0 %v63
    %420 = vmatprep.subr.mxu0 %v60
    %421 = vmatpush1.msra.mxu0 %v59
    %422 = vmatprep.subr.mxu0 %v56
    %423 = vmatpush1.msra.mxu0 %v55
    %424 = vmatprep.subr.mxu0 0.0
    %425 = vmatpush2.msra.mxu0 0.0
    %426 = vmatprep.subr.mxu0 0.0
    %427 = vmatpush2.msra.mxu0 0.0
    %428 = vmatprep.subr.mxu0 0.0
    %429 = vmatpush2.msra.mxu0 0.0
    %430 = vmatprep.subr.mxu0 0.0
    %431 = vmatpush2.msra.mxu0 0.0
    %432 = vmatprep.subr.mxu0 0.0
    %433 = vmatpush2.msra.mxu0 0.0
    %434 = vmatprep.subr.mxu0 0.0
    %435 = vmatpush2.msra.mxu0 0.0
    %436 = vmatprep.subr.mxu0 0.0
    %437 = vmatpush2.msra.mxu0 0.0
    %438 = vmatprep.subr.mxu0 0.0
    %439 = vmatpush2.msra.mxu0 0.0
    %440 = vmatprep.subr.mxu0 0.0
    %441 = vmatpush2.msra.mxu0 0.0
    %442 = vmatprep.subr.mxu0 0.0
    %443 = vmatpush2.msra.mxu0 0.0
    %444 = vmatprep.subr.mxu0 0.0
    %445 = vmatpush2.msra.mxu0 0.0
    %446 = vmatprep.subr.mxu0 0.0
    %447 = vmatpush2.msra.mxu0 0.0
    %448 = vmatprep.subr.mxu0 0.0
    %449 = vmatpush2.msra.mxu0 0.0
    %450 = vmatprep.subr.mxu0 0.0
    %451 = vmatpush2.msra.mxu0 0.0
    %452 = vmatprep.subr.mxu0 0.0
    %453 = vmatpush2.msra.mxu0 0.0
    %454 = vmatprep.subr.mxu0 0.0
    %455 = vmatpush2.msra.mxu0 0.0
    %456 = vmatprep.mubr.f32.mxu0 0.0
    %457 = vmatmul.mubr.f32.gmra.mxu0 %v311
    %v458 = vpop.f32.mrf.mxu0
    %v459 = vadd.f32 0.0, %v458
    %v460 = vpop.f32.mrf.mxu0
    %v461 = vadd.f32 0.0, %v460
    %462 = vdwg.mxu0
    %v463 = vadd.f32 %v317, %v388
    %v464 = vadd.f32 %v318, %v390
    %v465 = vadd.f32 %v319, %v459
    %v466 = vadd.f32 %v320, %v461
    %v467 = vxor.u32 %v463, 2147483648
    %v468 = vmul.f32 %v467, 1.442695
    %v469 = vpow.pop %v468
    %v470 = vadd.f32 %v469, 1.0
    %v471 = vrcp.pop %v470
    %v472 = vmul.f32 1.0, %v471
    %v473 = vxor.u32 %v464, 2147483648
    %v474 = vmul.f32 %v473, 1.442695
    %v475 = vpow.pop %v474
    %v476 = vadd.f32 %v475, 1.0
    %v477 = vrcp.pop %v476
    %v478 = vmul.f32 1.0, %v477
    %v479 = vtanh.pop %v465
    %v480 = vxor.u32 %v466, 2147483648
    %v481 = vmul.f32 %v480, 1.442695
    %v482 = vpow.pop %v481
    %v483 = vadd.f32 %v482, 1.0
    %v484 = vrcp.pop %v483
    %v485 = vmul.f32 1.0, %v484
    %v486 = vmul.f32 %v478, %v314
    %v487 = vmul.f32 %v472, %v479
    %v488 = vadd.f32 %v486, %v487
    %v489 = vtanh.pop %v488
    %v490 = vmul.f32 %v485, %v489
    %v491 = vstv %s315
    %vm492 = vcmp.gt.s32.totalorder %v52, %v491
    %v493 = vsel %vm492, 1, 0
    %v494 = vcvt.s32.f32 %v493
    %496 = vset.pattern.permute.xlu0 0
    %497 = vperm.xlu0 %496, %v494
    %v498 = vpop.permute.xlu0 %497
    %v500 = vmul.f32 %v498, %v490
    %v501 = vsub.f32 1.0, %v494
    %503 = vset.pattern.permute.xlu0 0
    %504 = vperm.xlu0 %503, %v501
    %v505 = vpop.permute.xlu0 %504
    %v507 = vmul.f32 %v505, %v311
    %v508 = vadd.f32 %v500, %v507
    %v509 = vmul.f32 %v498, %v488
    %v510 = vmul.f32 %v505, %v314
    %v511 = vadd.f32 %v509, %v510
    %s512 = sadd.s32 %s119, 2
    %s513 = scalar_lea.vmem [#allocation4], 64
    %v514 = vld [vmem:[%s513] sm:$0xff]
    %v515 = vld [vmem:[%s513 + $0x8] sm:$0xff]
    %v516 = vld [vmem:[%s513 + $0x10] sm:$0xff]
    %v517 = vld [vmem:[%s513 + $0x18] sm:$0xff]
    %518 = vmatprep.subr.mxu0 %v114
    %519 = vmatpush1.msra.mxu0 %v113
    %520 = vmatprep.subr.mxu0 %v110
    %521 = vmatpush1.msra.mxu0 %v109
    %522 = vmatprep.subr.mxu0 %v106
    %523 = vmatpush1.msra.mxu0 %v105
    %524 = vmatprep.subr.mxu0 %v102
    %525 = vmatpush1.msra.mxu0 %v101
    %526 = vmatprep.subr.mxu0 %v98
    %527 = vmatpush1.msra.mxu0 %v97
    %528 = vmatprep.subr.mxu0 %v94
    %529 = vmatpush1.msra.mxu0 %v93
    %530 = vmatprep.subr.mxu0 %v90
    %531 = vmatpush1.msra.mxu0 %v89
    %532 = vmatprep.subr.mxu0 %v86
    %533 = vmatpush1.msra.mxu0 %v85
    %534 = vmatprep.subr.mxu0 %v82
    %535 = vmatpush1.msra.mxu0 %v81
    %536 = vmatprep.subr.mxu0 %v78
    %537 = vmatpush1.msra.mxu0 %v77
    %538 = vmatprep.subr.mxu0 %v74
    %539 = vmatpush1.msra.mxu0 %v73
    %540 = vmatprep.subr.mxu0 %v70
    %541 = vmatpush1.msra.mxu0 %v69
    %542 = vmatprep.subr.mxu0 %v66
    %543 = vmatpush1.msra.mxu0 %v65
    %544 = vmatprep.subr.mxu0 %v62
    %545 = vmatpush1.msra.mxu0 %v61
    %546 = vmatprep.subr.mxu0 %v58
    %547 = vmatpush1.msra.mxu0 %v57
    %548 = vmatprep.subr.mxu0 %v54
    %549 = vmatpush1.msra.mxu0 %v53
    %550 = vmatprep.subr.mxu0 0.0
    %551 = vmatpush2.msra.mxu0 0.0
    %552 = vmatprep.subr.mxu0 0.0
    %553 = vmatpush2.msra.mxu0 0.0
    %554 = vmatprep.subr.mxu0 0.0
    %555 = vmatpush2.msra.mxu0 0.0
    %556 = vmatprep.subr.mxu0 0.0
    %557 = vmatpush2.msra.mxu0 0.0
    %558 = vmatprep.subr.mxu0 0.0
    %559 = vmatpush2.msra.mxu0 0.0
    %560 = vmatprep.subr.mxu0 0.0
    %561 = vmatpush2.msra.mxu0 0.0
    %562 = vmatprep.subr.mxu0 0.0
    %563 = vmatpush2.msra.mxu0 0.0
    %564 = vmatprep.subr.mxu0 0.0
    %565 = vmatpush2.msra.mxu0 0.0
    %566 = vmatprep.subr.mxu0 0.0
    %567 = vmatpush2.msra.mxu0 0.0
    %568 = vmatprep.subr.mxu0 0.0
    %569 = vmatpush2.msra.mxu0 0.0
    %570 = vmatprep.subr.mxu0 0.0
    %571 = vmatpush2.msra.mxu0 0.0
    %572 = vmatprep.subr.mxu0 0.0
    %573 = vmatpush2.msra.mxu0 0.0
    %574 = vmatprep.subr.mxu0 0.0
    %575 = vmatpush2.msra.mxu0 0.0
    %576 = vmatprep.subr.mxu0 0.0
    %577 = vmatpush2.msra.mxu0 0.0
    %578 = vmatprep.subr.mxu0 0.0
    %579 = vmatpush2.msra.mxu0 0.0
    %580 = vmatprep.subr.mxu0 0.0
    %581 = vmatpush2.msra.mxu0 0.0
    %582 = vmatprep.mubr.f32.mxu0 0.0
    %583 = vmatmul.mubr.f32.gmra.mxu0 %v508
    %v584 = vpop.f32.mrf.mxu0
    %v585 = vadd.f32 0.0, %v584
    %v586 = vpop.f32.mrf.mxu0
    %v587 = vadd.f32 0.0, %v586
    %588 = vdwg.mxu0
    %589 = vmatprep.subr.mxu0 %v116
    %590 = vmatpush1.msra.mxu0 %v115
    %591 = vmatprep.subr.mxu0 %v112
    %592 = vmatpush1.msra.mxu0 %v111
    %593 = vmatprep.subr.mxu0 %v108
    %594 = vmatpush1.msra.mxu0 %v107
    %595 = vmatprep.subr.mxu0 %v104
    %596 = vmatpush1.msra.mxu0 %v103
    %597 = vmatprep.subr.mxu0 %v100
    %598 = vmatpush1.msra.mxu0 %v99
    %599 = vmatprep.subr.mxu0 %v96
    %600 = vmatpush1.msra.mxu0 %v95
    %601 = vmatprep.subr.mxu0 %v92
    %602 = vmatpush1.msra.mxu0 %v91
    %603 = vmatprep.subr.mxu0 %v88
    %604 = vmatpush1.msra.mxu0 %v87
    %605 = vmatprep.subr.mxu0 %v84
    %606 = vmatpush1.msra.mxu0 %v83
    %607 = vmatprep.subr.mxu0 %v80
    %608 = vmatpush1.msra.mxu0 %v79
    %609 = vmatprep.subr.mxu0 %v76
    %610 = vmatpush1.msra.mxu0 %v75
    %611 = vmatprep.subr.mxu0 %v72
    %612 = vmatpush1.msra.mxu0 %v71
    %613 = vmatprep.subr.mxu0 %v68
    %614 = vmatpush1.msra.mxu0 %v67
    %615 = vmatprep.subr.mxu0 %v64
    %616 = vmatpush1.msra.mxu0 %v63
    %617 = vmatprep.subr.mxu0 %v60
    %618 = vmatpush1.msra.mxu0 %v59
    %619 = vmatprep.subr.mxu0 %v56
    %620 = vmatpush1.msra.mxu0 %v55
    %621 = vmatprep.subr.mxu0 0.0
    %622 = vmatpush2.msra.mxu0 0.0
    %623 = vmatprep.subr.mxu0 0.0
    %624 = vmatpush2.msra.mxu0 0.0
    %625 = vmatprep.subr.mxu0 0.0
    %626 = vmatpush2.msra.mxu0 0.0
    %627 = vmatprep.subr.mxu0 0.0
    %628 = vmatpush2.msra.mxu0 0.0
    %629 = vmatprep.subr.mxu0 0.0
    %630 = vmatpush2.msra.mxu0 0.0
    %631 = vmatprep.subr.mxu0 0.0
    %632 = vmatpush2.msra.mxu0 0.0
    %633 = vmatprep.subr.mxu0 0.0
    %634 = vmatpush2.msra.mxu0 0.0
    %635 = vmatprep.subr.mxu0 0.0
    %636 = vmatpush2.msra.mxu0 0.0
    %637 = vmatprep.subr.mxu0 0.0
    %638 = vmatpush2.msra.mxu0 0.0
    %639 = vmatprep.subr.mxu0 0.0
    %640 = vmatpush2.msra.mxu0 0.0
    %641 = vmatprep.subr.mxu0 0.0
    %642 = vmatpush2.msra.mxu0 0.0
    %643 = vmatprep.subr.mxu0 0.0
    %644 = vmatpush2.msra.mxu0 0.0
    %645 = vmatprep.subr.mxu0 0.0
    %646 = vmatpush2.msra.mxu0 0.0
    %647 = vmatprep.subr.mxu0 0.0
    %648 = vmatpush2.msra.mxu0 0.0
    %649 = vmatprep.subr.mxu0 0.0
    %650 = vmatpush2.msra.mxu0 0.0
    %651 = vmatprep.subr.mxu0 0.0
    %652 = vmatpush2.msra.mxu0 0.0
    %653 = vmatprep.mubr.f32.mxu0 0.0
    %654 = vmatmul.mubr.f32.gmra.mxu0 %v508
    %v655 = vpop.f32.mrf.mxu0
    %v656 = vadd.f32 0.0, %v655
    %v657 = vpop.f32.mrf.mxu0
    %v658 = vadd.f32 0.0, %v657
    %659 = vdwg.mxu0
    %v660 = vadd.f32 %v514, %v585
    %v661 = vadd.f32 %v515, %v587
    %v662 = vadd.f32 %v516, %v656
    %v663 = vadd.f32 %v517, %v658
    %v664 = vxor.u32 %v660, 2147483648
    %v665 = vmul.f32 %v664, 1.442695
    %v666 = vpow.pop %v665
    %v667 = vadd.f32 %v666, 1.0
    %v668 = vrcp.pop %v667
    %v669 = vmul.f32 1.0, %v668
    %v670 = vxor.u32 %v661, 2147483648
    %v671 = vmul.f32 %v670, 1.442695
    %v672 = vpow.pop %v671
    %v673 = vadd.f32 %v672, 1.0
    %v674 = vrcp.pop %v673
    %v675 = vmul.f32 1.0, %v674
    %v676 = vtanh.pop %v662
    %v677 = vxor.u32 %v663, 2147483648
    %v678 = vmul.f32 %v677, 1.442695
    %v679 = vpow.pop %v678
    %v680 = vadd.f32 %v679, 1.0
    %v681 = vrcp.pop %v680
    %v682 = vmul.f32 1.0, %v681
    %v683 = vmul.f32 %v675, %v511
    %v684 = vmul.f32 %v669, %v676
    %v685 = vadd.f32 %v683, %v684
    %v686 = vtanh.pop %v685
    %v687 = vmul.f32 %v682, %v686
    %v688 = vstv %s512
    %vm689 = vcmp.gt.s32.totalorder %v52, %v688
    %v690 = vsel %vm689, 1, 0
    %v691 = vcvt.s32.f32 %v690
    %693 = vset.pattern.permute.xlu0 0
    %694 = vperm.xlu0 %693, %v691
    %v695 = vpop.permute.xlu0 %694
    %v697 = vmul.f32 %v695, %v687
    %v698 = vsub.f32 1.0, %v691
    %700 = vset.pattern.permute.xlu0 0
    %701 = vperm.xlu0 %700, %v698
    %v702 = vpop.permute.xlu0 %701
    %v704 = vmul.f32 %v702, %v508
    %v705 = vadd.f32 %v697, %v704
    %v706 = vmul.f32 %v695, %v685
    %v707 = vmul.f32 %v702, %v511
    %v708 = vadd.f32 %v706, %v707
    %s709 = sadd.s32 %s119, 3
    %s710 = scalar_lea.vmem [#allocation4], 96
    %v711 = vld [vmem:[%s710] sm:$0xff]
    %v712 = vld [vmem:[%s710 + $0x8] sm:$0xff]
    %v713 = vld [vmem:[%s710 + $0x10] sm:$0xff]
    %v714 = vld [vmem:[%s710 + $0x18] sm:$0xff]
    %715 = vmatprep.subr.mxu0 %v114
    %716 = vmatpush1.msra.mxu0 %v113
    %717 = vmatprep.subr.mxu0 %v110
    %718 = vmatpush1.msra.mxu0 %v109
    %719 = vmatprep.subr.mxu0 %v106
    %720 = vmatpush1.msra.mxu0 %v105
    %721 = vmatprep.subr.mxu0 %v102
    %722 = vmatpush1.msra.mxu0 %v101
    %723 = vmatprep.subr.mxu0 %v98
    %724 = vmatpush1.msra.mxu0 %v97
    %725 = vmatprep.subr.mxu0 %v94
    %726 = vmatpush1.msra.mxu0 %v93
    %727 = vmatprep.subr.mxu0 %v90
    %728 = vmatpush1.msra.mxu0 %v89
    %729 = vmatprep.subr.mxu0 %v86
    %730 = vmatpush1.msra.mxu0 %v85
    %731 = vmatprep.subr.mxu0 %v82
    %732 = vmatpush1.msra.mxu0 %v81
    %733 = vmatprep.subr.mxu0 %v78
    %734 = vmatpush1.msra.mxu0 %v77
    %735 = vmatprep.subr.mxu0 %v74
    %736 = vmatpush1.msra.mxu0 %v73
    %737 = vmatprep.subr.mxu0 %v70
    %738 = vmatpush1.msra.mxu0 %v69
    %739 = vmatprep.subr.mxu0 %v66
    %740 = vmatpush1.msra.mxu0 %v65
    %741 = vmatprep.subr.mxu0 %v62
    %742 = vmatpush1.msra.mxu0 %v61
    %743 = vmatprep.subr.mxu0 %v58
    %744 = vmatpush1.msra.mxu0 %v57
    %745 = vmatprep.subr.mxu0 %v54
    %746 = vmatpush1.msra.mxu0 %v53
    %747 = vmatprep.subr.mxu0 0.0
    %748 = vmatpush2.msra.mxu0 0.0
    %749 = vmatprep.subr.mxu0 0.0
    %750 = vmatpush2.msra.mxu0 0.0
    %751 = vmatprep.subr.mxu0 0.0
    %752 = vmatpush2.msra.mxu0 0.0
    %753 = vmatprep.subr.mxu0 0.0
    %754 = vmatpush2.msra.mxu0 0.0
    %755 = vmatprep.subr.mxu0 0.0
    %756 = vmatpush2.msra.mxu0 0.0
    %757 = vmatprep.subr.mxu0 0.0
    %758 = vmatpush2.msra.mxu0 0.0
    %759 = vmatprep.subr.mxu0 0.0
    %760 = vmatpush2.msra.mxu0 0.0
    %761 = vmatprep.subr.mxu0 0.0
    %762 = vmatpush2.msra.mxu0 0.0
    %763 = vmatprep.subr.mxu0 0.0
    %764 = vmatpush2.msra.mxu0 0.0
    %765 = vmatprep.subr.mxu0 0.0
    %766 = vmatpush2.msra.mxu0 0.0
    %767 = vmatprep.subr.mxu0 0.0
    %768 = vmatpush2.msra.mxu0 0.0
    %769 = vmatprep.subr.mxu0 0.0
    %770 = vmatpush2.msra.mxu0 0.0
    %771 = vmatprep.subr.mxu0 0.0
    %772 = vmatpush2.msra.mxu0 0.0
    %773 = vmatprep.subr.mxu0 0.0
    %774 = vmatpush2.msra.mxu0 0.0
    %775 = vmatprep.subr.mxu0 0.0
    %776 = vmatpush2.msra.mxu0 0.0
    %777 = vmatprep.subr.mxu0 0.0
    %778 = vmatpush2.msra.mxu0 0.0
    %779 = vmatprep.mubr.f32.mxu0 0.0
    %780 = vmatmul.mubr.f32.gmra.mxu0 %v705
    %v781 = vpop.f32.mrf.mxu0
    %v782 = vadd.f32 0.0, %v781
    %v783 = vpop.f32.mrf.mxu0
    %v784 = vadd.f32 0.0, %v783
    %785 = vdwg.mxu0
    %786 = vmatprep.subr.mxu0 %v116
    %787 = vmatpush1.msra.mxu0 %v115
    %788 = vmatprep.subr.mxu0 %v112
    %789 = vmatpush1.msra.mxu0 %v111
    %790 = vmatprep.subr.mxu0 %v108
    %791 = vmatpush1.msra.mxu0 %v107
    %792 = vmatprep.subr.mxu0 %v104
    %793 = vmatpush1.msra.mxu0 %v103
    %794 = vmatprep.subr.mxu0 %v100
    %795 = vmatpush1.msra.mxu0 %v99
    %796 = vmatprep.subr.mxu0 %v96
    %797 = vmatpush1.msra.mxu0 %v95
    %798 = vmatprep.subr.mxu0 %v92
    %799 = vmatpush1.msra.mxu0 %v91
    %800 = vmatprep.subr.mxu0 %v88
    %801 = vmatpush1.msra.mxu0 %v87
    %802 = vmatprep.subr.mxu0 %v84
    %803 = vmatpush1.msra.mxu0 %v83
    %804 = vmatprep.subr.mxu0 %v80
    %805 = vmatpush1.msra.mxu0 %v79
    %806 = vmatprep.subr.mxu0 %v76
    %807 = vmatpush1.msra.mxu0 %v75
    %808 = vmatprep.subr.mxu0 %v72
    %809 = vmatpush1.msra.mxu0 %v71
    %810 = vmatprep.subr.mxu0 %v68
    %811 = vmatpush1.msra.mxu0 %v67
    %812 = vmatprep.subr.mxu0 %v64
    %813 = vmatpush1.msra.mxu0 %v63
    %814 = vmatprep.subr.mxu0 %v60
    %815 = vmatpush1.msra.mxu0 %v59
    %816 = vmatprep.subr.mxu0 %v56
    %817 = vmatpush1.msra.mxu0 %v55
    %818 = vmatprep.subr.mxu0 0.0
    %819 = vmatpush2.msra.mxu0 0.0
    %820 = vmatprep.subr.mxu0 0.0
    %821 = vmatpush2.msra.mxu0 0.0
    %822 = vmatprep.subr.mxu0 0.0
    %823 = vmatpush2.msra.mxu0 0.0
    %824 = vmatprep.subr.mxu0 0.0
    %825 = vmatpush2.msra.mxu0 0.0
    %826 = vmatprep.subr.mxu0 0.0
    %827 = vmatpush2.msra.mxu0 0.0
    %828 = vmatprep.subr.mxu0 0.0
    %829 = vmatpush2.msra.mxu0 0.0
    %830 = vmatprep.subr.mxu0 0.0
    %831 = vmatpush2.msra.mxu0 0.0
    %832 = vmatprep.subr.mxu0 0.0
    %833 = vmatpush2.msra.mxu0 0.0
    %834 = vmatprep.subr.mxu0 0.0
    %835 = vmatpush2.msra.mxu0 0.0
    %836 = vmatprep.subr.mxu0 0.0
    %837 = vmatpush2.msra.mxu0 0.0
    %838 = vmatprep.subr.mxu0 0.0
    %839 = vmatpush2.msra.mxu0 0.0
    %840 = vmatprep.subr.mxu0 0.0
    %841 = vmatpush2.msra.mxu0 0.0
    %842 = vmatprep.subr.mxu0 0.0
    %843 = vmatpush2.msra.mxu0 0.0
    %844 = vmatprep.subr.mxu0 0.0
    %845 = vmatpush2.msra.mxu0 0.0
    %846 = vmatprep.subr.mxu0 0.0
    %847 = vmatpush2.msra.mxu0 0.0
    %848 = vmatprep.subr.mxu0 0.0
    %849 = vmatpush2.msra.mxu0 0.0
    %850 = vmatprep.mubr.f32.mxu0 0.0
    %851 = vmatmul.mubr.f32.gmra.mxu0 %v705
    %v852 = vpop.f32.mrf.mxu0
    %v853 = vadd.f32 0.0, %v852
    %v854 = vpop.f32.mrf.mxu0
    %v855 = vadd.f32 0.0, %v854
    %856 = vdwg.mxu0
    %v857 = vadd.f32 %v711, %v782
    %v858 = vadd.f32 %v712, %v784
    %v859 = vadd.f32 %v713, %v853
    %v860 = vadd.f32 %v714, %v855
    %v861 = vxor.u32 %v857, 2147483648
    %v862 = vmul.f32 %v861, 1.442695
    %v863 = vpow.pop %v862
    %v864 = vadd.f32 %v863, 1.0
    %v865 = vrcp.pop %v864
    %v866 = vmul.f32 1.0, %v865
    %v867 = vxor.u32 %v858, 2147483648
    %v868 = vmul.f32 %v867, 1.442695
    %v869 = vpow.pop %v868
    %v870 = vadd.f32 %v869, 1.0
    %v871 = vrcp.pop %v870
    %v872 = vmul.f32 1.0, %v871
    %v873 = vtanh.pop %v859
    %v874 = vxor.u32 %v860, 2147483648
    %v875 = vmul.f32 %v874, 1.442695
    %v876 = vpow.pop %v875
    %v877 = vadd.f32 %v876, 1.0
    %v878 = vrcp.pop %v877
    %v879 = vmul.f32 1.0, %v878
    %v880 = vmul.f32 %v872, %v708
    %v881 = vmul.f32 %v866, %v873
    %v882 = vadd.f32 %v880, %v881
    %v883 = vtanh.pop %v882
    %v884 = vmul.f32 %v879, %v883
    %v885 = vstv %s709
    %vm886 = vcmp.gt.s32.totalorder %v52, %v885
    %v887 = vsel %vm886, 1, 0
    %v888 = vcvt.s32.f32 %v887
    %890 = vset.pattern.permute.xlu0 0
    %891 = vperm.xlu0 %890, %v888
    %v892 = vpop.permute.xlu0 %891
    %v894 = vmul.f32 %v892, %v884
    %v895 = vsub.f32 1.0, %v888
    %897 = vset.pattern.permute.xlu0 0
    %898 = vperm.xlu0 %897, %v895
    %v899 = vpop.permute.xlu0 %898
    %v901 = vmul.f32 %v899, %v705
    %v902 = vadd.f32 %v894, %v901
    %v903 = vmul.f32 %v892, %v882
    %v904 = vmul.f32 %v899, %v708
    %v905 = vadd.f32 %v903, %v904
    %s906 = sadd.s32 %s119, 4
    %s907 = scalar_lea.vmem [#allocation4], 128
    %v908 = vld [vmem:[%s907] sm:$0xff]
    %v909 = vld [vmem:[%s907 + $0x8] sm:$0xff]
    %v910 = vld [vmem:[%s907 + $0x10] sm:$0xff]
    %v911 = vld [vmem:[%s907 + $0x18] sm:$0xff]
    %912 = vmatprep.subr.mxu0 %v114
    %913 = vmatpush1.msra.mxu0 %v113
    %914 = vmatprep.subr.mxu0 %v110
    %915 = vmatpush1.msra.mxu0 %v109
    %916 = vmatprep.subr.mxu0 %v106
    %917 = vmatpush1.msra.mxu0 %v105
    %918 = vmatprep.subr.mxu0 %v102
    %919 = vmatpush1.msra.mxu0 %v101
    %920 = vmatprep.subr.mxu0 %v98
    %921 = vmatpush1.msra.mxu0 %v97
    %922 = vmatprep.subr.mxu0 %v94
    %923 = vmatpush1.msra.mxu0 %v93
    %924 = vmatprep.subr.mxu0 %v90
    %925 = vmatpush1.msra.mxu0 %v89
    %926 = vmatprep.subr.mxu0 %v86
    %927 = vmatpush1.msra.mxu0 %v85
    %928 = vmatprep.subr.mxu0 %v82
    %929 = vmatpush1.msra.mxu0 %v81
    %930 = vmatprep.subr.mxu0 %v78
    %931 = vmatpush1.msra.mxu0 %v77
    %932 = vmatprep.subr.mxu0 %v74
    %933 = vmatpush1.msra.mxu0 %v73
    %934 = vmatprep.subr.mxu0 %v70
    %935 = vmatpush1.msra.mxu0 %v69
    %936 = vmatprep.subr.mxu0 %v66
    %937 = vmatpush1.msra.mxu0 %v65
    %938 = vmatprep.subr.mxu0 %v62
    %939 = vmatpush1.msra.mxu0 %v61
    %940 = vmatprep.subr.mxu0 %v58
    %941 = vmatpush1.msra.mxu0 %v57
    %942 = vmatprep.subr.mxu0 %v54
    %943 = vmatpush1.msra.mxu0 %v53
    %944 = vmatprep.subr.mxu0 0.0
    %945 = vmatpush2.msra.mxu0 0.0
    %946 = vmatprep.subr.mxu0 0.0
    %947 = vmatpush2.msra.mxu0 0.0
    %948 = vmatprep.subr.mxu0 0.0
    %949 = vmatpush2.msra.mxu0 0.0
    %950 = vmatprep.subr.mxu0 0.0
    %951 = vmatpush2.msra.mxu0 0.0
    %952 = vmatprep.subr.mxu0 0.0
    %953 = vmatpush2.msra.mxu0 0.0
    %954 = vmatprep.subr.mxu0 0.0
    %955 = vmatpush2.msra.mxu0 0.0
    %956 = vmatprep.subr.mxu0 0.0
    %957 = vmatpush2.msra.mxu0 0.0
    %958 = vmatprep.subr.mxu0 0.0
    %959 = vmatpush2.msra.mxu0 0.0
    %960 = vmatprep.subr.mxu0 0.0
    %961 = vmatpush2.msra.mxu0 0.0
    %962 = vmatprep.subr.mxu0 0.0
    %963 = vmatpush2.msra.mxu0 0.0
    %964 = vmatprep.subr.mxu0 0.0
    %965 = vmatpush2.msra.mxu0 0.0
    %966 = vmatprep.subr.mxu0 0.0
    %967 = vmatpush2.msra.mxu0 0.0
    %968 = vmatprep.subr.mxu0 0.0
    %969 = vmatpush2.msra.mxu0 0.0
    %970 = vmatprep.subr.mxu0 0.0
    %971 = vmatpush2.msra.mxu0 0.0
    %972 = vmatprep.subr.mxu0 0.0
    %973 = vmatpush2.msra.mxu0 0.0
    %974 = vmatprep.subr.mxu0 0.0
    %975 = vmatpush2.msra.mxu0 0.0
    %976 = vmatprep.mubr.f32.mxu0 0.0
    %977 = vmatmul.mubr.f32.gmra.mxu0 %v902
    %v978 = vpop.f32.mrf.mxu0
    %v979 = vadd.f32 0.0, %v978
    %v980 = vpop.f32.mrf.mxu0
    %v981 = vadd.f32 0.0, %v980
    %982 = vdwg.mxu0
    %983 = vmatprep.subr.mxu0 %v116
    %984 = vmatpush1.msra.mxu0 %v115
    %985 = vmatprep.subr.mxu0 %v112
    %986 = vmatpush1.msra.mxu0 %v111
    %987 = vmatprep.subr.mxu0 %v108
    %988 = vmatpush1.msra.mxu0 %v107
    %989 = vmatprep.subr.mxu0 %v104
    %990 = vmatpush1.msra.mxu0 %v103
    %991 = vmatprep.subr.mxu0 %v100
    %992 = vmatpush1.msra.mxu0 %v99
    %993 = vmatprep.subr.mxu0 %v96
    %994 = vmatpush1.msra.mxu0 %v95
    %995 = vmatprep.subr.mxu0 %v92
    %996 = vmatpush1.msra.mxu0 %v91
    %997 = vmatprep.subr.mxu0 %v88
    %998 = vmatpush1.msra.mxu0 %v87
    %999 = vmatprep.subr.mxu0 %v84
    %1000 = vmatpush1.msra.mxu0 %v83
    %1001 = vmatprep.subr.mxu0 %v80
    %1002 = vmatpush1.msra.mxu0 %v79
    %1003 = vmatprep.subr.mxu0 %v76
    %1004 = vmatpush1.msra.mxu0 %v75
    %1005 = vmatprep.subr.mxu0 %v72
    %1006 = vmatpush1.msra.mxu0 %v71
    %1007 = vmatprep.subr.mxu0 %v68
    %1008 = vmatpush1.msra.mxu0 %v67
    %1009 = vmatprep.subr.mxu0 %v64
    %1010 = vmatpush1.msra.mxu0 %v63
    %1011 = vmatprep.subr.mxu0 %v60
    %1012 = vmatpush1.msra.mxu0 %v59
    %1013 = vmatprep.subr.mxu0 %v56
    %1014 = vmatpush1.msra.mxu0 %v55
    %1015 = vmatprep.subr.mxu0 0.0
    %1016 = vmatpush2.msra.mxu0 0.0
    %1017 = vmatprep.subr.mxu0 0.0
    %1018 = vmatpush2.msra.mxu0 0.0
    %1019 = vmatprep.subr.mxu0 0.0
    %1020 = vmatpush2.msra.mxu0 0.0
    %1021 = vmatprep.subr.mxu0 0.0
    %1022 = vmatpush2.msra.mxu0 0.0
    %1023 = vmatprep.subr.mxu0 0.0
    %1024 = vmatpush2.msra.mxu0 0.0
    %1025 = vmatprep.subr.mxu0 0.0
    %1026 = vmatpush2.msra.mxu0 0.0
    %1027 = vmatprep.subr.mxu0 0.0
    %1028 = vmatpush2.msra.mxu0 0.0
    %1029 = vmatprep.subr.mxu0 0.0
    %1030 = vmatpush2.msra.mxu0 0.0
    %1031 = vmatprep.subr.mxu0 0.0
    %1032 = vmatpush2.msra.mxu0 0.0
    %1033 = vmatprep.subr.mxu0 0.0
    %1034 = vmatpush2.msra.mxu0 0.0
    %1035 = vmatprep.subr.mxu0 0.0
    %1036 = vmatpush2.msra.mxu0 0.0
    %1037 = vmatprep.subr.mxu0 0.0
    %1038 = vmatpush2.msra.mxu0 0.0
    %1039 = vmatprep.subr.mxu0 0.0
    %1040 = vmatpush2.msra.mxu0 0.0
    %1041 = vmatprep.subr.mxu0 0.0
    %1042 = vmatpush2.msra.mxu0 0.0
    %1043 = vmatprep.subr.mxu0 0.0
    %1044 = vmatpush2.msra.mxu0 0.0
    %1045 = vmatprep.subr.mxu0 0.0
    %1046 = vmatpush2.msra.mxu0 0.0
    %1047 = vmatprep.mubr.f32.mxu0 0.0
    %1048 = vmatmul.mubr.f32.gmra.mxu0 %v902
    %v1049 = vpop.f32.mrf.mxu0
    %v1050 = vadd.f32 0.0, %v1049
    %v1051 = vpop.f32.mrf.mxu0
    %v1052 = vadd.f32 0.0, %v1051
    %1053 = vdwg.mxu0
    %v1054 = vadd.f32 %v908, %v979
    %v1055 = vadd.f32 %v909, %v981
    %v1056 = vadd.f32 %v910, %v1050
    %v1057 = vadd.f32 %v911, %v1052
    %v1058 = vxor.u32 %v1054, 2147483648
    %v1059 = vmul.f32 %v1058, 1.442695
    %v1060 = vpow.pop %v1059
    %v1061 = vadd.f32 %v1060, 1.0
    %v1062 = vrcp.pop %v1061
    %v1063 = vmul.f32 1.0, %v1062
    %v1064 = vxor.u32 %v1055, 2147483648
    %v1065 = vmul.f32 %v1064, 1.442695
    %v1066 = vpow.pop %v1065
    %v1067 = vadd.f32 %v1066, 1.0
    %v1068 = vrcp.pop %v1067
    %v1069 = vmul.f32 1.0, %v1068
    %v1070 = vtanh.pop %v1056
    %v1071 = vxor.u32 %v1057, 2147483648
    %v1072 = vmul.f32 %v1071, 1.442695
    %v1073 = vpow.pop %v1072
    %v1074 = vadd.f32 %v1073, 1.0
    %v1075 = vrcp.pop %v1074
    %v1076 = vmul.f32 1.0, %v1075
    %v1077 = vmul.f32 %v1069, %v905
    %v1078 = vmul.f32 %v1063, %v1070
    %v1079 = vadd.f32 %v1077, %v1078
    %v1080 = vtanh.pop %v1079
    %v1081 = vmul.f32 %v1076, %v1080
    %v1082 = vstv %s906
    %vm1083 = vcmp.gt.s32.totalorder %v52, %v1082
    %v1084 = vsel %vm1083, 1, 0
    %v1085 = vcvt.s32.f32 %v1084
    %1087 = vset.pattern.permute.xlu0 0
    %1088 = vperm.xlu0 %1087, %v1085
    %v1089 = vpop.permute.xlu0 %1088
    %v1091 = vmul.f32 %v1089, %v1081
    %v1092 = vsub.f32 1.0, %v1085
    %1094 = vset.pattern.permute.xlu0 0
    %1095 = vperm.xlu0 %1094, %v1092
    %v1096 = vpop.permute.xlu0 %1095
    %v1098 = vmul.f32 %v1096, %v902
    %v1099 = vadd.f32 %v1091, %v1098
    %v1100 = vmul.f32 %v1089, %v1079
    %v1101 = vmul.f32 %v1096, %v905
    %v1102 = vadd.f32 %v1100, %v1101
    %s1103 = sadd.s32 %s119, 5
    %s1104 = scalar_lea.vmem [#allocation4], 160
    %v1105 = vld [vmem:[%s1104] sm:$0xff]
    %v1106 = vld [vmem:[%s1104 + $0x8] sm:$0xff]
    %v1107 = vld [vmem:[%s1104 + $0x10] sm:$0xff]
    %v1108 = vld [vmem:[%s1104 + $0x18] sm:$0xff]
    %1109 = vmatprep.subr.mxu0 %v114
    %1110 = vmatpush1.msra.mxu0 %v113
    %1111 = vmatprep.subr.mxu0 %v110
    %1112 = vmatpush1.msra.mxu0 %v109
    %1113 = vmatprep.subr.mxu0 %v106
    %1114 = vmatpush1.msra.mxu0 %v105
    %1115 = vmatprep.subr.mxu0 %v102
    %1116 = vmatpush1.msra.mxu0 %v101
    %1117 = vmatprep.subr.mxu0 %v98
    %1118 = vmatpush1.msra.mxu0 %v97
    %1119 = vmatprep.subr.mxu0 %v94
    %1120 = vmatpush1.msra.mxu0 %v93
    %1121 = vmatprep.subr.mxu0 %v90
    %1122 = vmatpush1.msra.mxu0 %v89
    %1123 = vmatprep.subr.mxu0 %v86
    %1124 = vmatpush1.msra.mxu0 %v85
    %1125 = vmatprep.subr.mxu0 %v82
    %1126 = vmatpush1.msra.mxu0 %v81
    %1127 = vmatprep.subr.mxu0 %v78
    %1128 = vmatpush1.msra.mxu0 %v77
    %1129 = vmatprep.subr.mxu0 %v74
    %1130 = vmatpush1.msra.mxu0 %v73
    %1131 = vmatprep.subr.mxu0 %v70
    %1132 = vmatpush1.msra.mxu0 %v69
    %1133 = vmatprep.subr.mxu0 %v66
    %1134 = vmatpush1.msra.mxu0 %v65
    %1135 = vmatprep.subr.mxu0 %v62
    %1136 = vmatpush1.msra.mxu0 %v61
    %1137 = vmatprep.subr.mxu0 %v58
    %1138 = vmatpush1.msra.mxu0 %v57
    %1139 = vmatprep.subr.mxu0 %v54
    %1140 = vmatpush1.msra.mxu0 %v53
    %1141 = vmatprep.subr.mxu0 0.0
    %1142 = vmatpush2.msra.mxu0 0.0
    %1143 = vmatprep.subr.mxu0 0.0
    %1144 = vmatpush2.msra.mxu0 0.0
    %1145 = vmatprep.subr.mxu0 0.0
    %1146 = vmatpush2.msra.mxu0 0.0
    %1147 = vmatprep.subr.mxu0 0.0
    %1148 = vmatpush2.msra.mxu0 0.0
    %1149 = vmatprep.subr.mxu0 0.0
    %1150 = vmatpush2.msra.mxu0 0.0
    %1151 = vmatprep.subr.mxu0 0.0
    %1152 = vmatpush2.msra.mxu0 0.0
    %1153 = vmatprep.subr.mxu0 0.0
    %1154 = vmatpush2.msra.mxu0 0.0
    %1155 = vmatprep.subr.mxu0 0.0
    %1156 = vmatpush2.msra.mxu0 0.0
    %1157 = vmatprep.subr.mxu0 0.0
    %1158 = vmatpush2.msra.mxu0 0.0
    %1159 = vmatprep.subr.mxu0 0.0
    %1160 = vmatpush2.msra.mxu0 0.0
    %1161 = vmatprep.subr.mxu0 0.0
    %1162 = vmatpush2.msra.mxu0 0.0
    %1163 = vmatprep.subr.mxu0 0.0
    %1164 = vmatpush2.msra.mxu0 0.0
    %1165 = vmatprep.subr.mxu0 0.0
    %1166 = vmatpush2.msra.mxu0 0.0
    %1167 = vmatprep.subr.mxu0 0.0
    %1168 = vmatpush2.msra.mxu0 0.0
    %1169 = vmatprep.subr.mxu0 0.0
    %1170 = vmatpush2.msra.mxu0 0.0
    %1171 = vmatprep.subr.mxu0 0.0
    %1172 = vmatpush2.msra.mxu0 0.0
    %1173 = vmatprep.mubr.f32.mxu0 0.0
    %1174 = vmatmul.mubr.f32.gmra.mxu0 %v1099
    %v1175 = vpop.f32.mrf.mxu0
    %v1176 = vadd.f32 0.0, %v1175
    %v1177 = vpop.f32.mrf.mxu0
    %v1178 = vadd.f32 0.0, %v1177
    %1179 = vdwg.mxu0
    %1180 = vmatprep.subr.mxu0 %v116
    %1181 = vmatpush1.msra.mxu0 %v115
    %1182 = vmatprep.subr.mxu0 %v112
    %1183 = vmatpush1.msra.mxu0 %v111
    %1184 = vmatprep.subr.mxu0 %v108
    %1185 = vmatpush1.msra.mxu0 %v107
    %1186 = vmatprep.subr.mxu0 %v104
    %1187 = vmatpush1.msra.mxu0 %v103
    %1188 = vmatprep.subr.mxu0 %v100
    %1189 = vmatpush1.msra.mxu0 %v99
    %1190 = vmatprep.subr.mxu0 %v96
    %1191 = vmatpush1.msra.mxu0 %v95
    %1192 = vmatprep.subr.mxu0 %v92
    %1193 = vmatpush1.msra.mxu0 %v91
    %1194 = vmatprep.subr.mxu0 %v88
    %1195 = vmatpush1.msra.mxu0 %v87
    %1196 = vmatprep.subr.mxu0 %v84
    %1197 = vmatpush1.msra.mxu0 %v83
    %1198 = vmatprep.subr.mxu0 %v80
    %1199 = vmatpush1.msra.mxu0 %v79
    %1200 = vmatprep.subr.mxu0 %v76
    %1201 = vmatpush1.msra.mxu0 %v75
    %1202 = vmatprep.subr.mxu0 %v72
    %1203 = vmatpush1.msra.mxu0 %v71
    %1204 = vmatprep.subr.mxu0 %v68
    %1205 = vmatpush1.msra.mxu0 %v67
    %1206 = vmatprep.subr.mxu0 %v64
    %1207 = vmatpush1.msra.mxu0 %v63
    %1208 = vmatprep.subr.mxu0 %v60
    %1209 = vmatpush1.msra.mxu0 %v59
    %1210 = vmatprep.subr.mxu0 %v56
    %1211 = vmatpush1.msra.mxu0 %v55
    %1212 = vmatprep.subr.mxu0 0.0
    %1213 = vmatpush2.msra.mxu0 0.0
    %1214 = vmatprep.subr.mxu0 0.0
    %1215 = vmatpush2.msra.mxu0 0.0
    %1216 = vmatprep.subr.mxu0 0.0
    %1217 = vmatpush2.msra.mxu0 0.0
    %1218 = vmatprep.subr.mxu0 0.0
    %1219 = vmatpush2.msra.mxu0 0.0
    %1220 = vmatprep.subr.mxu0 0.0
    %1221 = vmatpush2.msra.mxu0 0.0
    %1222 = vmatprep.subr.mxu0 0.0
    %1223 = vmatpush2.msra.mxu0 0.0
    %1224 = vmatprep.subr.mxu0 0.0
    %1225 = vmatpush2.msra.mxu0 0.0
    %1226 = vmatprep.subr.mxu0 0.0
    %1227 = vmatpush2.msra.mxu0 0.0
    %1228 = vmatprep.subr.mxu0 0.0
    %1229 = vmatpush2.msra.mxu0 0.0
    %1230 = vmatprep.subr.mxu0 0.0
    %1231 = vmatpush2.msra.mxu0 0.0
    %1232 = vmatprep.subr.mxu0 0.0
    %1233 = vmatpush2.msra.mxu0 0.0
    %1234 = vmatprep.subr.mxu0 0.0
    %1235 = vmatpush2.msra.mxu0 0.0
    %1236 = vmatprep.subr.mxu0 0.0
    %1237 = vmatpush2.msra.mxu0 0.0
    %1238 = vmatprep.subr.mxu0 0.0
    %1239 = vmatpush2.msra.mxu0 0.0
    %1240 = vmatprep.subr.mxu0 0.0
    %1241 = vmatpush2.msra.mxu0 0.0
    %1242 = vmatprep.subr.mxu0 0.0
    %1243 = vmatpush2.msra.mxu0 0.0
    %1244 = vmatprep.mubr.f32.mxu0 0.0
    %1245 = vmatmul.mubr.f32.gmra.mxu0 %v1099
    %v1246 = vpop.f32.mrf.mxu0
    %v1247 = vadd.f32 0.0, %v1246
    %v1248 = vpop.f32.mrf.mxu0
    %v1249 = vadd.f32 0.0, %v1248
    %1250 = vdwg.mxu0
    %v1251 = vadd.f32 %v1105, %v1176
    %v1252 = vadd.f32 %v1106, %v1178
    %v1253 = vadd.f32 %v1107, %v1247
    %v1254 = vadd.f32 %v1108, %v1249
    %v1255 = vxor.u32 %v1251, 2147483648
    %v1256 = vmul.f32 %v1255, 1.442695
    %v1257 = vpow.pop %v1256
    %v1258 = vadd.f32 %v1257, 1.0
    %v1259 = vrcp.pop %v1258
    %v1260 = vmul.f32 1.0, %v1259
    %v1261 = vxor.u32 %v1252, 2147483648
    %v1262 = vmul.f32 %v1261, 1.442695
    %v1263 = vpow.pop %v1262
    %v1264 = vadd.f32 %v1263, 1.0
    %v1265 = vrcp.pop %v1264
    %v1266 = vmul.f32 1.0, %v1265
    %v1267 = vtanh.pop %v1253
    %v1268 = vxor.u32 %v1254, 2147483648
    %v1269 = vmul.f32 %v1268, 1.442695
    %v1270 = vpow.pop %v1269
    %v1271 = vadd.f32 %v1270, 1.0
    %v1272 = vrcp.pop %v1271
    %v1273 = vmul.f32 1.0, %v1272
    %v1274 = vmul.f32 %v1266, %v1102
    %v1275 = vmul.f32 %v1260, %v1267
    %v1276 = vadd.f32 %v1274, %v1275
    %v1277 = vtanh.pop %v1276
    %v1278 = vmul.f32 %v1273, %v1277
    %v1279 = vstv %s1103
    %vm1280 = vcmp.gt.s32.totalorder %v52, %v1279
    %v1281 = vsel %vm1280, 1, 0
    %v1282 = vcvt.s32.f32 %v1281
    %1284 = vset.pattern.permute.xlu0 0
    %1285 = vperm.xlu0 %1284, %v1282
    %v1286 = vpop.permute.xlu0 %1285
    %v1288 = vmul.f32 %v1286, %v1278
    %v1289 = vsub.f32 1.0, %v1282
    %1291 = vset.pattern.permute.xlu0 0
    %1292 = vperm.xlu0 %1291, %v1289
    %v1293 = vpop.permute.xlu0 %1292
    %v1295 = vmul.f32 %v1293, %v1099
    %v1296 = vadd.f32 %v1288, %v1295
    %v1297 = vmul.f32 %v1286, %v1276
    %v1298 = vmul.f32 %v1293, %v1102
    %v1299 = vadd.f32 %v1297, %v1298
    %s1300 = sadd.s32 %s119, 6
    %s1301 = scalar_lea.vmem [#allocation4], 192
    %v1302 = vld [vmem:[%s1301] sm:$0xff]
    %v1303 = vld [vmem:[%s1301 + $0x8] sm:$0xff]
    %v1304 = vld [vmem:[%s1301 + $0x10] sm:$0xff]
    %v1305 = vld [vmem:[%s1301 + $0x18] sm:$0xff]
    %1306 = vmatprep.subr.mxu0 %v114
    %1307 = vmatpush1.msra.mxu0 %v113
    %1308 = vmatprep.subr.mxu0 %v110
    %1309 = vmatpush1.msra.mxu0 %v109
    %1310 = vmatprep.subr.mxu0 %v106
    %1311 = vmatpush1.msra.mxu0 %v105
    %1312 = vmatprep.subr.mxu0 %v102
    %1313 = vmatpush1.msra.mxu0 %v101
    %1314 = vmatprep.subr.mxu0 %v98
    %1315 = vmatpush1.msra.mxu0 %v97
    %1316 = vmatprep.subr.mxu0 %v94
    %1317 = vmatpush1.msra.mxu0 %v93
    %1318 = vmatprep.subr.mxu0 %v90
    %1319 = vmatpush1.msra.mxu0 %v89
    %1320 = vmatprep.subr.mxu0 %v86
    %1321 = vmatpush1.msra.mxu0 %v85
    %1322 = vmatprep.subr.mxu0 %v82
    %1323 = vmatpush1.msra.mxu0 %v81
    %1324 = vmatprep.subr.mxu0 %v78
    %1325 = vmatpush1.msra.mxu0 %v77
    %1326 = vmatprep.subr.mxu0 %v74
    %1327 = vmatpush1.msra.mxu0 %v73
    %1328 = vmatprep.subr.mxu0 %v70
    %1329 = vmatpush1.msra.mxu0 %v69
    %1330 = vmatprep.subr.mxu0 %v66
    %1331 = vmatpush1.msra.mxu0 %v65
    %1332 = vmatprep.subr.mxu0 %v62
    %1333 = vmatpush1.msra.mxu0 %v61
    %1334 = vmatprep.subr.mxu0 %v58
    %1335 = vmatpush1.msra.mxu0 %v57
    %1336 = vmatprep.subr.mxu0 %v54
    %1337 = vmatpush1.msra.mxu0 %v53
    %1338 = vmatprep.subr.mxu0 0.0
    %1339 = vmatpush2.msra.mxu0 0.0
    %1340 = vmatprep.subr.mxu0 0.0
    %1341 = vmatpush2.msra.mxu0 0.0
    %1342 = vmatprep.subr.mxu0 0.0
    %1343 = vmatpush2.msra.mxu0 0.0
    %1344 = vmatprep.subr.mxu0 0.0
    %1345 = vmatpush2.msra.mxu0 0.0
    %1346 = vmatprep.subr.mxu0 0.0
    %1347 = vmatpush2.msra.mxu0 0.0
    %1348 = vmatprep.subr.mxu0 0.0
    %1349 = vmatpush2.msra.mxu0 0.0
    %1350 = vmatprep.subr.mxu0 0.0
    %1351 = vmatpush2.msra.mxu0 0.0
    %1352 = vmatprep.subr.mxu0 0.0
    %1353 = vmatpush2.msra.mxu0 0.0
    %1354 = vmatprep.subr.mxu0 0.0
    %1355 = vmatpush2.msra.mxu0 0.0
    %1356 = vmatprep.subr.mxu0 0.0
    %1357 = vmatpush2.msra.mxu0 0.0
    %1358 = vmatprep.subr.mxu0 0.0
    %1359 = vmatpush2.msra.mxu0 0.0
    %1360 = vmatprep.subr.mxu0 0.0
    %1361 = vmatpush2.msra.mxu0 0.0
    %1362 = vmatprep.subr.mxu0 0.0
    %1363 = vmatpush2.msra.mxu0 0.0
    %1364 = vmatprep.subr.mxu0 0.0
    %1365 = vmatpush2.msra.mxu0 0.0
    %1366 = vmatprep.subr.mxu0 0.0
    %1367 = vmatpush2.msra.mxu0 0.0
    %1368 = vmatprep.subr.mxu0 0.0
    %1369 = vmatpush2.msra.mxu0 0.0
    %1370 = vmatprep.mubr.f32.mxu0 0.0
    %1371 = vmatmul.mubr.f32.gmra.mxu0 %v1296
    %v1372 = vpop.f32.mrf.mxu0
    %v1373 = vadd.f32 0.0, %v1372
    %v1374 = vpop.f32.mrf.mxu0
    %v1375 = vadd.f32 0.0, %v1374
    %1376 = vdwg.mxu0
    %1377 = vmatprep.subr.mxu0 %v116
    %1378 = vmatpush1.msra.mxu0 %v115
    %1379 = vmatprep.subr.mxu0 %v112
    %1380 = vmatpush1.msra.mxu0 %v111
    %1381 = vmatprep.subr.mxu0 %v108
    %1382 = vmatpush1.msra.mxu0 %v107
    %1383 = vmatprep.subr.mxu0 %v104
    %1384 = vmatpush1.msra.mxu0 %v103
    %1385 = vmatprep.subr.mxu0 %v100
    %1386 = vmatpush1.msra.mxu0 %v99
    %1387 = vmatprep.subr.mxu0 %v96
    %1388 = vmatpush1.msra.mxu0 %v95
    %1389 = vmatprep.subr.mxu0 %v92
    %1390 = vmatpush1.msra.mxu0 %v91
    %1391 = vmatprep.subr.mxu0 %v88
    %1392 = vmatpush1.msra.mxu0 %v87
    %1393 = vmatprep.subr.mxu0 %v84
    %1394 = vmatpush1.msra.mxu0 %v83
    %1395 = vmatprep.subr.mxu0 %v80
    %1396 = vmatpush1.msra.mxu0 %v79
    %1397 = vmatprep.subr.mxu0 %v76
    %1398 = vmatpush1.msra.mxu0 %v75
    %1399 = vmatprep.subr.mxu0 %v72
    %1400 = vmatpush1.msra.mxu0 %v71
    %1401 = vmatprep.subr.mxu0 %v68
    %1402 = vmatpush1.msra.mxu0 %v67
    %1403 = vmatprep.subr.mxu0 %v64
    %1404 = vmatpush1.msra.mxu0 %v63
    %1405 = vmatprep.subr.mxu0 %v60
    %1406 = vmatpush1.msra.mxu0 %v59
    %1407 = vmatprep.subr.mxu0 %v56
    %1408 = vmatpush1.msra.mxu0 %v55
    %1409 = vmatprep.subr.mxu0 0.0
    %1410 = vmatpush2.msra.mxu0 0.0
    %1411 = vmatprep.subr.mxu0 0.0
    %1412 = vmatpush2.msra.mxu0 0.0
    %1413 = vmatprep.subr.mxu0 0.0
    %1414 = vmatpush2.msra.mxu0 0.0
    %1415 = vmatprep.subr.mxu0 0.0
    %1416 = vmatpush2.msra.mxu0 0.0
    %1417 = vmatprep.subr.mxu0 0.0
    %1418 = vmatpush2.msra.mxu0 0.0
    %1419 = vmatprep.subr.mxu0 0.0
    %1420 = vmatpush2.msra.mxu0 0.0
    %1421 = vmatprep.subr.mxu0 0.0
    %1422 = vmatpush2.msra.mxu0 0.0
    %1423 = vmatprep.subr.mxu0 0.0
    %1424 = vmatpush2.msra.mxu0 0.0
    %1425 = vmatprep.subr.mxu0 0.0
    %1426 = vmatpush2.msra.mxu0 0.0
    %1427 = vmatprep.subr.mxu0 0.0
    %1428 = vmatpush2.msra.mxu0 0.0
    %1429 = vmatprep.subr.mxu0 0.0
    %1430 = vmatpush2.msra.mxu0 0.0
    %1431 = vmatprep.subr.mxu0 0.0
    %1432 = vmatpush2.msra.mxu0 0.0
    %1433 = vmatprep.subr.mxu0 0.0
    %1434 = vmatpush2.msra.mxu0 0.0
    %1435 = vmatprep.subr.mxu0 0.0
    %1436 = vmatpush2.msra.mxu0 0.0
    %1437 = vmatprep.subr.mxu0 0.0
    %1438 = vmatpush2.msra.mxu0 0.0
    %1439 = vmatprep.subr.mxu0 0.0
    %1440 = vmatpush2.msra.mxu0 0.0
    %1441 = vmatprep.mubr.f32.mxu0 0.0
    %1442 = vmatmul.mubr.f32.gmra.mxu0 %v1296
    %v1443 = vpop.f32.mrf.mxu0
    %v1444 = vadd.f32 0.0, %v1443
    %v1445 = vpop.f32.mrf.mxu0
    %v1446 = vadd.f32 0.0, %v1445
    %1447 = vdwg.mxu0
    %v1448 = vadd.f32 %v1302, %v1373
    %v1449 = vadd.f32 %v1303, %v1375
    %v1450 = vadd.f32 %v1304, %v1444
    %v1451 = vadd.f32 %v1305, %v1446
    %v1452 = vxor.u32 %v1448, 2147483648
    %v1453 = vmul.f32 %v1452, 1.442695
    %v1454 = vpow.pop %v1453
    %v1455 = vadd.f32 %v1454, 1.0
    %v1456 = vrcp.pop %v1455
    %v1457 = vmul.f32 1.0, %v1456
    %v1458 = vxor.u32 %v1449, 2147483648
    %v1459 = vmul.f32 %v1458, 1.442695
    %v1460 = vpow.pop %v1459
    %v1461 = vadd.f32 %v1460, 1.0
    %v1462 = vrcp.pop %v1461
    %v1463 = vmul.f32 1.0, %v1462
    %v1464 = vtanh.pop %v1450
    %v1465 = vxor.u32 %v1451, 2147483648
    %v1466 = vmul.f32 %v1465, 1.442695
    %v1467 = vpow.pop %v1466
    %v1468 = vadd.f32 %v1467, 1.0
    %v1469 = vrcp.pop %v1468
    %v1470 = vmul.f32 1.0, %v1469
    %v1471 = vmul.f32 %v1463, %v1299
    %v1472 = vmul.f32 %v1457, %v1464
    %v1473 = vadd.f32 %v1471, %v1472
    %v1474 = vtanh.pop %v1473
    %v1475 = vmul.f32 %v1470, %v1474
    %v1476 = vstv %s1300
    %vm1477 = vcmp.gt.s32.totalorder %v52, %v1476
    %v1478 = vsel %vm1477, 1, 0
    %v1479 = vcvt.s32.f32 %v1478
    %1481 = vset.pattern.permute.xlu0 0
    %1482 = vperm.xlu0 %1481, %v1479
    %v1483 = vpop.permute.xlu0 %1482
    %v1485 = vmul.f32 %v1483, %v1475
    %v1486 = vsub.f32 1.0, %v1479
    %1488 = vset.pattern.permute.xlu0 0
    %1489 = vperm.xlu0 %1488, %v1486
    %v1490 = vpop.permute.xlu0 %1489
    %v1492 = vmul.f32 %v1490, %v1296
    %v1493 = vadd.f32 %v1485, %v1492
    %v1494 = vmul.f32 %v1483, %v1473
    %v1495 = vmul.f32 %v1490, %v1299
    %v1496 = vadd.f32 %v1494, %v1495
    %s1497 = sadd.s32 %s119, 7
    %s1498 = scalar_lea.vmem [#allocation4], 224
    %v1499 = vld [vmem:[%s1498] sm:$0xff]
    %v1500 = vld [vmem:[%s1498 + $0x8] sm:$0xff]
    %v1501 = vld [vmem:[%s1498 + $0x10] sm:$0xff]
    %v1502 = vld [vmem:[%s1498 + $0x18] sm:$0xff]
    %1503 = vmatprep.subr.mxu0 %v114
    %1504 = vmatpush1.msra.mxu0 %v113
    %1505 = vmatprep.subr.mxu0 %v110
    %1506 = vmatpush1.msra.mxu0 %v109
    %1507 = vmatprep.subr.mxu0 %v106
    %1508 = vmatpush1.msra.mxu0 %v105
    %1509 = vmatprep.subr.mxu0 %v102
    %1510 = vmatpush1.msra.mxu0 %v101
    %1511 = vmatprep.subr.mxu0 %v98
    %1512 = vmatpush1.msra.mxu0 %v97
    %1513 = vmatprep.subr.mxu0 %v94
    %1514 = vmatpush1.msra.mxu0 %v93
    %1515 = vmatprep.subr.mxu0 %v90
    %1516 = vmatpush1.msra.mxu0 %v89
    %1517 = vmatprep.subr.mxu0 %v86
    %1518 = vmatpush1.msra.mxu0 %v85
    %1519 = vmatprep.subr.mxu0 %v82
    %1520 = vmatpush1.msra.mxu0 %v81
    %1521 = vmatprep.subr.mxu0 %v78
    %1522 = vmatpush1.msra.mxu0 %v77
    %1523 = vmatprep.subr.mxu0 %v74
    %1524 = vmatpush1.msra.mxu0 %v73
    %1525 = vmatprep.subr.mxu0 %v70
    %1526 = vmatpush1.msra.mxu0 %v69
    %1527 = vmatprep.subr.mxu0 %v66
    %1528 = vmatpush1.msra.mxu0 %v65
    %1529 = vmatprep.subr.mxu0 %v62
    %1530 = vmatpush1.msra.mxu0 %v61
    %1531 = vmatprep.subr.mxu0 %v58
    %1532 = vmatpush1.msra.mxu0 %v57
    %1533 = vmatprep.subr.mxu0 %v54
    %1534 = vmatpush1.msra.mxu0 %v53
    %1535 = vmatprep.subr.mxu0 0.0
    %1536 = vmatpush2.msra.mxu0 0.0
    %1537 = vmatprep.subr.mxu0 0.0
    %1538 = vmatpush2.msra.mxu0 0.0
    %1539 = vmatprep.subr.mxu0 0.0
    %1540 = vmatpush2.msra.mxu0 0.0
    %1541 = vmatprep.subr.mxu0 0.0
    %1542 = vmatpush2.msra.mxu0 0.0
    %1543 = vmatprep.subr.mxu0 0.0
    %1544 = vmatpush2.msra.mxu0 0.0
    %1545 = vmatprep.subr.mxu0 0.0
    %1546 = vmatpush2.msra.mxu0 0.0
    %1547 = vmatprep.subr.mxu0 0.0
    %1548 = vmatpush2.msra.mxu0 0.0
    %1549 = vmatprep.subr.mxu0 0.0
    %1550 = vmatpush2.msra.mxu0 0.0
    %1551 = vmatprep.subr.mxu0 0.0
    %1552 = vmatpush2.msra.mxu0 0.0
    %1553 = vmatprep.subr.mxu0 0.0
    %1554 = vmatpush2.msra.mxu0 0.0
    %1555 = vmatprep.subr.mxu0 0.0
    %1556 = vmatpush2.msra.mxu0 0.0
    %1557 = vmatprep.subr.mxu0 0.0
    %1558 = vmatpush2.msra.mxu0 0.0
    %1559 = vmatprep.subr.mxu0 0.0
    %1560 = vmatpush2.msra.mxu0 0.0
    %1561 = vmatprep.subr.mxu0 0.0
    %1562 = vmatpush2.msra.mxu0 0.0
    %1563 = vmatprep.subr.mxu0 0.0
    %1564 = vmatpush2.msra.mxu0 0.0
    %1565 = vmatprep.subr.mxu0 0.0
    %1566 = vmatpush2.msra.mxu0 0.0
    %1567 = vmatprep.mubr.f32.mxu0 0.0
    %1568 = vmatmul.mubr.f32.gmra.mxu0 %v1493
    %v1569 = vpop.f32.mrf.mxu0
    %v1570 = vadd.f32 0.0, %v1569
    %v1571 = vpop.f32.mrf.mxu0
    %v1572 = vadd.f32 0.0, %v1571
    %1573 = vdwg.mxu0
    %1574 = vmatprep.subr.mxu0 %v116
    %1575 = vmatpush1.msra.mxu0 %v115
    %1576 = vmatprep.subr.mxu0 %v112
    %1577 = vmatpush1.msra.mxu0 %v111
    %1578 = vmatprep.subr.mxu0 %v108
    %1579 = vmatpush1.msra.mxu0 %v107
    %1580 = vmatprep.subr.mxu0 %v104
    %1581 = vmatpush1.msra.mxu0 %v103
    %1582 = vmatprep.subr.mxu0 %v100
    %1583 = vmatpush1.msra.mxu0 %v99
    %1584 = vmatprep.subr.mxu0 %v96
    %1585 = vmatpush1.msra.mxu0 %v95
    %1586 = vmatprep.subr.mxu0 %v92
    %1587 = vmatpush1.msra.mxu0 %v91
    %1588 = vmatprep.subr.mxu0 %v88
    %1589 = vmatpush1.msra.mxu0 %v87
    %1590 = vmatprep.subr.mxu0 %v84
    %1591 = vmatpush1.msra.mxu0 %v83
    %1592 = vmatprep.subr.mxu0 %v80
    %1593 = vmatpush1.msra.mxu0 %v79
    %1594 = vmatprep.subr.mxu0 %v76
    %1595 = vmatpush1.msra.mxu0 %v75
    %1596 = vmatprep.subr.mxu0 %v72
    %1597 = vmatpush1.msra.mxu0 %v71
    %1598 = vmatprep.subr.mxu0 %v68
    %1599 = vmatpush1.msra.mxu0 %v67
    %1600 = vmatprep.subr.mxu0 %v64
    %1601 = vmatpush1.msra.mxu0 %v63
    %1602 = vmatprep.subr.mxu0 %v60
    %1603 = vmatpush1.msra.mxu0 %v59
    %1604 = vmatprep.subr.mxu0 %v56
    %1605 = vmatpush1.msra.mxu0 %v55
    %1606 = vmatprep.subr.mxu0 0.0
    %1607 = vmatpush2.msra.mxu0 0.0
    %1608 = vmatprep.subr.mxu0 0.0
    %1609 = vmatpush2.msra.mxu0 0.0
    %1610 = vmatprep.subr.mxu0 0.0
    %1611 = vmatpush2.msra.mxu0 0.0
    %1612 = vmatprep.subr.mxu0 0.0
    %1613 = vmatpush2.msra.mxu0 0.0
    %1614 = vmatprep.subr.mxu0 0.0
    %1615 = vmatpush2.msra.mxu0 0.0
    %1616 = vmatprep.subr.mxu0 0.0
    %1617 = vmatpush2.msra.mxu0 0.0
    %1618 = vmatprep.subr.mxu0 0.0
    %1619 = vmatpush2.msra.mxu0 0.0
    %1620 = vmatprep.subr.mxu0 0.0
    %1621 = vmatpush2.msra.mxu0 0.0
    %1622 = vmatprep.subr.mxu0 0.0
    %1623 = vmatpush2.msra.mxu0 0.0
    %1624 = vmatprep.subr.mxu0 0.0
    %1625 = vmatpush2.msra.mxu0 0.0
    %1626 = vmatprep.subr.mxu0 0.0
    %1627 = vmatpush2.msra.mxu0 0.0
    %1628 = vmatprep.subr.mxu0 0.0
    %1629 = vmatpush2.msra.mxu0 0.0
    %1630 = vmatprep.subr.mxu0 0.0
    %1631 = vmatpush2.msra.mxu0 0.0
    %1632 = vmatprep.subr.mxu0 0.0
    %1633 = vmatpush2.msra.mxu0 0.0
    %1634 = vmatprep.subr.mxu0 0.0
    %1635 = vmatpush2.msra.mxu0 0.0
    %1636 = vmatprep.subr.mxu0 0.0
    %1637 = vmatpush2.msra.mxu0 0.0
    %1638 = vmatprep.mubr.f32.mxu0 0.0
    %1639 = vmatmul.mubr.f32.gmra.mxu0 %v1493
    %v1640 = vpop.f32.mrf.mxu0
    %v1641 = vadd.f32 0.0, %v1640
    %v1642 = vpop.f32.mrf.mxu0
    %v1643 = vadd.f32 0.0, %v1642
    %1644 = vdwg.mxu0
    %v1645 = vadd.f32 %v1499, %v1570
    %v1646 = vadd.f32 %v1500, %v1572
    %v1647 = vadd.f32 %v1501, %v1641
    %v1648 = vadd.f32 %v1502, %v1643
    %v1649 = vxor.u32 %v1645, 2147483648
    %v1650 = vmul.f32 %v1649, 1.442695
    %v1651 = vpow.pop %v1650
    %v1652 = vadd.f32 %v1651, 1.0
    %v1653 = vrcp.pop %v1652
    %v1654 = vmul.f32 1.0, %v1653
    %v1655 = vxor.u32 %v1646, 2147483648
    %v1656 = vmul.f32 %v1655, 1.442695
    %v1657 = vpow.pop %v1656
    %v1658 = vadd.f32 %v1657, 1.0
    %v1659 = vrcp.pop %v1658
    %v1660 = vmul.f32 1.0, %v1659
    %v1661 = vtanh.pop %v1647
    %v1662 = vxor.u32 %v1648, 2147483648
    %v1663 = vmul.f32 %v1662, 1.442695
    %v1664 = vpow.pop %v1663
    %v1665 = vadd.f32 %v1664, 1.0
    %v1666 = vrcp.pop %v1665
    %v1667 = vmul.f32 1.0, %v1666
    %v1668 = vmul.f32 %v1660, %v1496
    %v1669 = vmul.f32 %v1654, %v1661
    %v1670 = vadd.f32 %v1668, %v1669
    %v1671 = vtanh.pop %v1670
    %v1672 = vmul.f32 %v1667, %v1671
    %v1673 = vstv %s1497
    %vm1674 = vcmp.gt.s32.totalorder %v52, %v1673
    %v1675 = vsel %vm1674, 1, 0
    %v1676 = vcvt.s32.f32 %v1675
    %1678 = vset.pattern.permute.xlu0 0
    %1679 = vperm.xlu0 %1678, %v1676
    %v1680 = vpop.permute.xlu0 %1679
    %v1682 = vmul.f32 %v1680, %v1672
    %v1683 = vsub.f32 1.0, %v1676
    %1685 = vset.pattern.permute.xlu0 0
    %1686 = vperm.xlu0 %1685, %v1683
    %v1687 = vpop.permute.xlu0 %1686
    %v1689 = vmul.f32 %v1687, %v1493
    %v1690 = vadd.f32 %v1682, %v1689
    %v1691 = vmul.f32 %v1680, %v1670
    %v1692 = vmul.f32 %v1687, %v1496
    %v1693 = vadd.f32 %v1691, %v1692
    %1694 = vst [vmem:[#allocation2] sm:$0xff] %v1690
    %1695 = vst [vmem:[#allocation3] sm:$0xff] %v1693
    // Predicated region
    $region26: #{tpu_custom_call.1} parent=1 // pred_check
      %p1696 = pneg %p46
    $region27: #{tpu_custom_call.1} parent=1 // pred_check_branch
      %1698 = sbr.rel (%p1696) target = $region29
    $region28: #{tpu_custom_call.1} parent=1 // pred_region
      %1699 = vst [vmem:[#allocation9] sm:$0xff] %v1690
      %1700 = vst [vmem:[#allocation10] sm:$0xff] %v1693
    $region29: #{tpu_custom_call.1} parent=1 // pred_fallthru
      _
    // Predicated region
    $region30: #{tpu_custom_call.1} parent=1 // pred_check
      _
    $region31: #{tpu_custom_call.1} parent=1 // pred_check_branch
      %1702 = sbr.rel (0) target = $region33
    $region32: #{tpu_custom_call.1} parent=1 // pred_region
      %s1704 = ssub.s32 128, 128
      %1705 = vsyncadd [#allocation6], %s1704
      %s1707 = sshll.u32 [#allocation9], 4
      %s1708 = int_to_ptr.vmem [resolvable:$true] %s1707
      %1710 = dma.vmem_to_hbm [thread:$0]  %s1708, 128, %s3, [#allocation6]
    $region33: #{tpu_custom_call.1} parent=1 // pred_fallthru
      _
    // Predicated region
    $region34: #{tpu_custom_call.1} parent=1 // pred_check
      _
    $region35: #{tpu_custom_call.1} parent=1 // pred_check_branch
      %1712 = sbr.rel (0) target = $region37
    $region36: #{tpu_custom_call.1} parent=1 // pred_region
      %s1714 = ssub.s32 128, 128
      %1715 = vsyncadd [#allocation11], %s1714
      %s1717 = sshll.u32 [#allocation10], 4
      %s1718 = int_to_ptr.vmem [resolvable:$true] %s1717
      %1720 = dma.vmem_to_hbm [thread:$0]  %s1718, 128, %s4, [#allocation11]
    $region37: #{tpu_custom_call.1} parent=1 // pred_fallthru
      _
    // Predicated region
    $region38: #{tpu_custom_call.1} parent=1 // pred_check
      _
    $region39: #{tpu_custom_call.1} parent=1 // pred_check_branch
      %1722 = sbr.rel (0) target = $region41
    $region40: #{tpu_custom_call.1} parent=1 // pred_region
      %1723 = dma.done [#allocation6], 128
    $region41: #{tpu_custom_call.1} parent=1 // pred_fallthru
      _
    // Predicated region
    $region42: #{tpu_custom_call.1} parent=1 // pred_check
      _
    $region43: #{tpu_custom_call.1} parent=1 // pred_check_branch
      %1725 = sbr.rel (0) target = $region45
    $region44: #{tpu_custom_call.1} parent=1 // pred_region
      %1726 = dma.done [#allocation11], 128
    $region45: #{tpu_custom_call.1} parent=1 // pred_fallthru
      _
    %1727 = vsyncpa [#allocation5], 1
    %1728 = vsyncpa [#allocation8], 1
    %1729 = vsyncpa [#allocation6], 1
    %1730 = vsyncpa [#allocation11], 1

</llo_original>
